<compile_context>
chip_gen: v7x
topology: tpu7x:2x2x1
jax: 0.10.0
libtpu: 0.0.40
codegen_flags: <defaults>
</compile_context>

<pallas_src>
import jax
import jax.numpy as jnp
from jax import lax
from jax.experimental import pallas as pl
from jax.experimental.pallas import tpu as pltpu


def _round_up(x, m):
    return (x + m - 1) // m * m


def lstm_recurrence_kernel(gx_ref, w_hh_ref, h_out_ref, h_scr, c_scr):
    """Serial LSTM recurrence over one (batch block, time chunk).

    gx_ref:    (Tc, Bc, 4*G) bf16  precomputed x_t @ W_ih + (b_ih + b_hh),
                                   gate order i, f, g, o with gate stride G
    w_hh_ref:  (G, 4*G)      bf16  hidden->gate weights, whole-array VMEM
                                   resident (single copy, no double buffer)
    h_out_ref: (Tc, Bc, G)   bf16  hidden state per step
    h_scr/c_scr: (Bc, G)     f32   recurrent state, persists across the time
                                   chunks of one batch block
    """
    t = pl.program_id(1)            # time-chunk index (innermost grid axis)

    @pl.when(t == 0)
    def _():
        h_scr[...] = jnp.zeros_like(h_scr)
        c_scr[...] = jnp.zeros_like(c_scr)

    tc, bc, _ = gx_ref.shape
    g = h_scr.shape[-1]
    hb = bc // 2                    # two independent batch half-chains

    def gate_update(gates, c):
        # Elementwise/state math stays in f32 (v5e has no bf16 VPU/EUP).
        i_g = jax.nn.sigmoid(gates[:, 0 * g:1 * g])
        f_g = jax.nn.sigmoid(gates[:, 1 * g:2 * g])
        g_g = jnp.tanh(gates[:, 2 * g:3 * g])
        o_g = jax.nn.sigmoid(gates[:, 3 * g:4 * g])
        c = f_g * c + i_g * g_g
        h = o_g * jnp.tanh(c)
        return h, c

    def step(s, carry):
        h0, c0, h1, c1 = carry
        # Re-read W_hh from VMEM inside the body: never keep the full weight
        # live in vregs across the whole unrolled serial loop.
        w = w_hh_ref[...]
        gx_s = gx_ref[s]                                   # (Bc, 4G) bf16
        # Two data-independent half-chains: half 0's sigmoid/tanh/VPU work
        # overlaps half 1's MXU pushes in the same bundle stream.
        g0 = gx_s[0:hb] + jnp.dot(h0.astype(jnp.bfloat16), w,
                                  preferred_element_type=jnp.float32)
        g1 = gx_s[hb:bc] + jnp.dot(h1.astype(jnp.bfloat16), w,
                                   preferred_element_type=jnp.float32)
        h0, c0 = gate_update(g0, c0)
        h1, c1 = gate_update(g1, c1)
        h_out_ref[s] = jnp.concatenate([h0, h1], axis=0).astype(h_out_ref.dtype)
        return (h0, c0, h1, c1)

    carry0 = (h_scr[0:hb, :], c_scr[0:hb, :], h_scr[hb:bc, :], c_scr[hb:bc, :])
    unroll = True if tc <= 32 else 8
    h0, c0, h1, c1 = lax.fori_loop(0, tc, step, carry0, unroll=unroll)
    h_scr[0:hb, :] = h0
    c_scr[0:hb, :] = c0
    h_scr[hb:bc, :] = h1
    c_scr[hb:bc, :] = c1


def _vmem_estimate_bytes(tc, bc, g):
    gx = 2 * tc * bc * 4 * g * 2       # bf16 gx blocks, double-buffered
    out = 2 * tc * bc * g * 2          # bf16 h_out blocks, double-buffered
    w = g * 4 * g * 2                  # bf16 W_hh, single resident copy
    carry = 2 * bc * g * 4             # f32 h/c scratch
    return gx + out + w + carry


def dkt_plus_forward(q, r, params, *, time_chunk=64, batch_block=128,
                     vmem_budget_bytes=24 * 1024 * 1024):
    """DKTPlus forward. q, r: int32 (B, T). Returns (B, T, num_c) float32."""
    emb = params["emb"]        # (2*num_c, E)
    w_ih = params["w_ih"]      # (E, 4H)   (PyTorch W_ih^T), gate order i,f,g,o
    w_hh = params["w_hh"]      # (H, 4H)   (PyTorch W_hh^T)
    b = params["b"]            # (1, 4H)   (= b_ih + b_hh)
    w_out = params["w_out"]    # (H, C)
    b_out = params["b_out"]    # (1, C)

    num_c = w_out.shape[-1]
    H = w_hh.shape[0]
    E = w_ih.shape[0]
    B, T = q.shape

    # ---- gate layout: packed gates for small H, per-gate 128-lane padding
    #      for production H >= 128.
    if 4 * H <= 128:
        G = H
        w_ih_p, w_hh_p, b_p = w_ih, w_hh, b
    else:
        G = _round_up(H, 128)
        w_ih_p = jnp.zeros((E, 4 * G), jnp.float32)
        w_hh_p = jnp.zeros((G, 4 * G), jnp.float32)
        b_p = jnp.zeros((1, 4 * G), jnp.float32)
        for gi in range(4):
            w_ih_p = w_ih_p.at[:, gi * G:gi * G + H].set(w_ih[:, gi * H:(gi + 1) * H])
            w_hh_p = w_hh_p.at[:H, gi * G:gi * G + H].set(w_hh[:, gi * H:(gi + 1) * H])
            b_p = b_p.at[:, gi * G:gi * G + H].set(b[:, gi * H:(gi + 1) * H])

    # ---- batch blocking: multiple of 16 (8 f32 sublanes x 2 halves); the
    #      leading "parallel" grid axis shards blocks across v7x's two TCs.
    Bc = min(_round_up(B, 16), _round_up(batch_block, 16))
    B_pad = _round_up(B, Bc)

    # ---- time chunking, auto-shrunk against a cross-generation VMEM budget.
    Tc = max(8, min(time_chunk, _round_up(T, 8)))
    while Tc > 8 and _vmem_estimate_bytes(Tc, Bc, G) > vmem_budget_bytes:
        Tc //= 2
    T_pad = _round_up(T, Tc)

    # ---- glue: interaction index + time-major embedding gather.
    x_tm = (q + num_c * r).T                              # (T, B)
    if B_pad != B:
        x_tm = jnp.pad(x_tm, ((0, 0), (0, B_pad - B)))    # pad rows discarded later
    xemb_tm = emb[x_tm]                                   # (T, B_pad, E)

    # ---- hoisted non-recurrent input matmul (one big MXU-dense matmul),
    #      materialized in bf16 to halve streamed HBM/VMEM bytes.
    gx = xemb_tm.reshape(T * B_pad, E) @ w_ih_p + b_p
    gx = gx.astype(jnp.bfloat16).reshape(T, B_pad, 4 * G)
    if T_pad != T:
        gx = jnp.pad(gx, ((0, T_pad - T), (0, 0), (0, 0)))
    w_hh_dev = w_hh_p.astype(jnp.bfloat16)

    vmem_limit = int(min(64 * 1024 * 1024,
                         max(4 * _vmem_estimate_bytes(Tc, Bc, G),
                             16 * 1024 * 1024)))

    h_all = pl.pallas_call(
        lstm_recurrence_kernel,
        out_shape=jax.ShapeDtypeStruct((T_pad, B_pad, G), jnp.bfloat16),
        grid_spec=pltpu.PrefetchScalarGridSpec(
            num_scalar_prefetch=0,
            grid=(B_pad // Bc, T_pad // Tc),
            in_specs=[
                pl.BlockSpec((Tc, Bc, 4 * G), lambda b, t: (t, b, 0)),
                # Whole-array, VMEM-resident, single copy (no double buffer).
                pl.BlockSpec(memory_space=pltpu.MemorySpace.VMEM),
            ],
            out_specs=pl.BlockSpec((Tc, Bc, G), lambda b, t: (t, b, 0)),
            scratch_shapes=[
                pltpu.VMEM((Bc, G), jnp.float32),   # h carry
                pltpu.VMEM((Bc, G), jnp.float32),   # c carry
            ],
        ),
        compiler_params=pltpu.CompilerParams(
            dimension_semantics=("parallel", "arbitrary"),
            vmem_limit_bytes=vmem_limit),
    )(gx, w_hh_dev)

    h_all = h_all[:T, :B, :H]                             # drop time/batch/lane padding

    # Dropout is identity at inference.  Hoisted output projection + sigmoid:
    # one big bf16 MXU matmul with f32 accumulation.
    y_tm = jax.nn.sigmoid(
        jnp.dot(h_all.reshape(T * B, H), w_out.astype(jnp.bfloat16),
                preferred_element_type=jnp.float32) + b_out)
    return y_tm.reshape(T, B, num_c).transpose(1, 0, 2)   # (B, T, C) batch-first


def dkt_plus_reference(q, r, params):
    """Pure-JAX f32 reference of the same forward pass (lax.scan LSTM)."""
    emb, w_ih, w_hh, b = params["emb"], params["w_ih"], params["w_hh"], params["b"]
    w_out, b_out = params["w_out"], params["b_out"]
    num_c = w_out.shape[-1]
    H = w_hh.shape[0]

    x = q + num_c * r
    xemb = emb[x]                                  # (B, T, E)
    B = xemb.shape[0]

    def step(carry, x_t):
        h, c = carry
        gates = x_t @ w_ih + h @ w_hh + b[0]
        i_g = jax.nn.sigmoid(gates[:, 0:H])
        f_g = jax.nn.sigmoid(gates[:, H:2 * H])
        g_g = jnp.tanh(gates[:, 2 * H:3 * H])
        o_g = jax.nn.sigmoid(gates[:, 3 * H:4 * H])
        c = f_g * c + i_g * g_g
        h = o_g * jnp.tanh(c)
        y = jax.nn.sigmoid(h @ w_out + b_out[0])
        return (h, c), y

    init = (jnp.zeros((B, H), jnp.float32), jnp.zeros((B, H), jnp.float32))
    _, ys = jax.lax.scan(step, init, jnp.transpose(xemb, (1, 0, 2)))
    return jnp.transpose(ys, (1, 0, 2))


def init_params(key, num_c, emb_size):
    """Deterministic synthetic parameters matching the PyTorch module shapes."""
    H = emb_size
    k = jax.random.split(key, 7)
    bound = 1.0 / jnp.sqrt(H)
    emb = jax.random.normal(k[0], (2 * num_c, emb_size), jnp.float32)
    # PyTorch LSTM stores W_ih: (4H, E), W_hh: (4H, H); we keep the transposes.
    w_ih = jax.random.uniform(k[1], (emb_size, 4 * H), jnp.float32, -bound, bound)
    w_hh = jax.random.uniform(k[2], (H, 4 * H), jnp.float32, -bound, bound)
    b_ih = jax.random.uniform(k[3], (4 * H,), jnp.float32, -bound, bound)
    b_hh = jax.random.uniform(k[4], (4 * H,), jnp.float32, -bound, bound)
    w_out = jax.random.uniform(k[5], (H, num_c), jnp.float32, -bound, bound)
    b_out = jax.random.uniform(k[6], (num_c,), jnp.float32, -bound, bound)
    return {
        "emb": emb,
        "w_ih": w_ih,
        "w_hh": w_hh,
        "b": (b_ih + b_hh)[None, :],
        "w_out": w_out,
        "b_out": b_out[None, :],
    }


if __name__ == "__main__":
    num_c, emb_size = 16, 32   # hidden_size == emb_size in DKTPlus
    B, T = 2, 8

    key = jax.random.PRNGKey(0)
    kp, kq, kr = jax.random.split(key, 3)
    params = init_params(kp, num_c, emb_size)
    q = jax.random.randint(kq, (B, T), 0, num_c, dtype=jnp.int32)
    r = jax.random.randint(kr, (B, T), 0, 2, dtype=jnp.int32)

    y = jax.block_until_ready(dkt_plus_forward(q, r, params))
    y_ref = jax.block_until_ready(dkt_plus_reference(q, r, params))

    assert y.shape == (B, T, num_c)
    # bf16 MXU operands / bf16 gx / bf16 h_out -> relaxed tolerance vs the
    # f32 reference (per review: gate behind the test tolerance).
    assert jnp.allclose(y, y_ref, atol=2e-2, rtol=2e-2), "mismatch vs JAX reference"

    print("KERNEL_OK")
</pallas_src>

<mosaic_0001>
module attributes {stable_mosaic.version = 11 : i64} {
  func.func @lstm_recurrence_kernel(%arg0: i32, %arg1: i32, %arg2: memref<8x16x128xbf16, #tpu.memory_space<vmem>>, %arg3: memref<32x128xbf16, #tpu.memory_space<vmem>>, %arg4: memref<8x16x32xbf16, #tpu.memory_space<vmem>>, %arg5: memref<16x32xf32, #tpu.memory_space<vmem>>, %arg6: memref<16x32xf32, #tpu.memory_space<vmem>>) attributes {dimension_semantics = [#tpu.dimension_semantics<parallel>, #tpu.dimension_semantics<arbitrary>], iteration_bounds = array<i64: 1, 1>, scalar_prefetch = 0 : i64, scratch_operands = 2 : i64, tpu.core_type = #tpu.core_type<tc>, window_params = [{transform_indices = @transform_0, window_bounds = array<i64: 8, 16, 128>}, {pipeline_mode = #tpu.pipeline_mode<synchronous>, transform_indices = @transform_1, window_bounds = array<i64: 32, 128>}, {transform_indices = @transform_2, window_bounds = array<i64: 8, 16, 32>}]} {
    %c0_i32 = arith.constant 0 : i32
    %0 = arith.cmpi eq, %arg1, %c0_i32 : i32
    %1 = arith.extui %0 : i1 to i32
    %c0_i32_0 = arith.constant 0 : i32
    %2 = arith.cmpi ne, %1, %c0_i32_0 : i32
    scf.if %2 {
      %cst_127 = arith.constant 0.000000e+00 : f32
      %571 = vector.broadcast %cst_127 : f32 to vector<16x32xf32>
      %c0_128 = arith.constant 0 : index
      %c0_129 = arith.constant 0 : index
      %572 = vector.load %arg5[%c0_128, %c0_129] : memref<16x32xf32, #tpu.memory_space<vmem>>, vector<16x32xf32>
      tpu.vector_store %arg5[%c0_128, %c0_129], %571 {strides = array<i32>} : memref<16x32xf32, #tpu.memory_space<vmem>>, vector<16x32xf32>,
      %cst_130 = arith.constant 0.000000e+00 : f32
      %573 = vector.broadcast %cst_130 : f32 to vector<16x32xf32>
      %c0_131 = arith.constant 0 : index
      %c0_132 = arith.constant 0 : index
      %574 = vector.load %arg6[%c0_131, %c0_132] : memref<16x32xf32, #tpu.memory_space<vmem>>, vector<16x32xf32>
      tpu.vector_store %arg6[%c0_131, %c0_132], %573 {strides = array<i32>} : memref<16x32xf32, #tpu.memory_space<vmem>>, vector<16x32xf32>,
    } else {
    }
    %c0 = arith.constant 0 : index
    %c0_1 = arith.constant 0 : index
    %3 = vector.load %arg5[%c0, %c0_1] : memref<16x32xf32, #tpu.memory_space<vmem>>, vector<8x32xf32>
    %c0_2 = arith.constant 0 : index
    %c0_3 = arith.constant 0 : index
    %4 = vector.load %arg6[%c0_2, %c0_3] : memref<16x32xf32, #tpu.memory_space<vmem>>, vector<8x32xf32>
    %c8 = arith.constant 8 : index
    %c0_4 = arith.constant 0 : index
    %5 = vector.load %arg5[%c8, %c0_4] : memref<16x32xf32, #tpu.memory_space<vmem>>, vector<8x32xf32>
    %c8_5 = arith.constant 8 : index
    %c0_6 = arith.constant 0 : index
    %6 = vector.load %arg6[%c8_5, %c0_6] : memref<16x32xf32, #tpu.memory_space<vmem>>, vector<8x32xf32>
    %c0_i32_7 = arith.constant 0 : i32
    %c0_8 = arith.constant 0 : index
    %c0_9 = arith.constant 0 : index
    %7 = vector.load %arg3[%c0_8, %c0_9] : memref<32x128xbf16, #tpu.memory_space<vmem>>, vector<32x128xbf16>
    %8 = arith.index_cast %c0_i32_7 : i32 to index
    %c0_10 = arith.constant 0 : index
    %c0_11 = arith.constant 0 : index
    %9 = vector.load %arg2[%8, %c0_10, %c0_11] : memref<8x16x128xbf16, #tpu.memory_space<vmem>>, vector<1x16x128xbf16>
    %10 = vector.shape_cast %9 : vector<1x16x128xbf16> to vector<16x128xbf16>
    %11 = vector.extract_strided_slice %10 {offsets = [0, 0], sizes = [8, 128], strides = [1, 1]} : vector<16x128xbf16> to vector<8x128xbf16>
    %12 = arith.truncf %3 : vector<8x32xf32> to vector<8x32xbf16>
    %cst = arith.constant dense<0.000000e+00> : vector<8x128xf32>
    %13 = tpu.matmul %12, %7, %cst {dimension_numbers = #tpu.dot_dimension_numbers<[1], [0], [0], [1], [0, 0, 1, 1], [], []>} : vector<8x32xbf16>, vector<32x128xbf16>, vector<8x128xf32> -> vector<8x128xf32>
    %14 = arith.extf %11 : vector<8x128xbf16> to vector<8x128xf32>
    %15 = arith.addf %14, %13 : vector<8x128xf32>
    %16 = vector.extract_strided_slice %10 {offsets = [8, 0], sizes = [8, 128], strides = [1, 1]} : vector<16x128xbf16> to vector<8x128xbf16>
    %17 = arith.truncf %5 : vector<8x32xf32> to vector<8x32xbf16>
    %cst_12 = arith.constant dense<0.000000e+00> : vector<8x128xf32>
    %18 = tpu.matmul %17, %7, %cst_12 {dimension_numbers = #tpu.dot_dimension_numbers<[1], [0], [0], [1], [0, 0, 1, 1], [], []>} : vector<8x32xbf16>, vector<32x128xbf16>, vector<8x128xf32> -> vector<8x128xf32>
    %19 = arith.extf %16 : vector<8x128xbf16> to vector<8x128xf32>
    %20 = arith.addf %19, %18 : vector<8x128xf32>
    %21 = vector.extract_strided_slice %15 {offsets = [0, 0], sizes = [8, 32], strides = [1, 1]} : vector<8x128xf32> to vector<8x32xf32>
    %22 = arith.negf %21 : vector<8x32xf32>
    %23 = math.exp %22 : vector<8x32xf32>
    %cst_13 = arith.constant 1.000000e+00 : f32
    %24 = vector.broadcast %cst_13 : f32 to vector<8x32xf32>
    %25 = arith.addf %24, %23 : vector<8x32xf32>
    %26 = arith.divf %24, %25 : vector<8x32xf32>
    %27 = vector.extract_strided_slice %15 {offsets = [0, 32], sizes = [8, 32], strides = [1, 1]} : vector<8x128xf32> to vector<8x32xf32>
    %28 = arith.negf %27 : vector<8x32xf32>
    %29 = math.exp %28 : vector<8x32xf32>
    %cst_14 = arith.constant 1.000000e+00 : f32
    %30 = vector.broadcast %cst_14 : f32 to vector<8x32xf32>
    %31 = arith.addf %30, %29 : vector<8x32xf32>
    %32 = arith.divf %30, %31 : vector<8x32xf32>
    %33 = vector.extract_strided_slice %15 {offsets = [0, 64], sizes = [8, 32], strides = [1, 1]} : vector<8x128xf32> to vector<8x32xf32>
    %34 = math.tanh %33 : vector<8x32xf32>
    %35 = vector.extract_strided_slice %15 {offsets = [0, 96], sizes = [8, 32], strides = [1, 1]} : vector<8x128xf32> to vector<8x32xf32>
    %36 = arith.negf %35 : vector<8x32xf32>
    %37 = math.exp %36 : vector<8x32xf32>
    %cst_15 = arith.constant 1.000000e+00 : f32
    %38 = vector.broadcast %cst_15 : f32 to vector<8x32xf32>
    %39 = arith.addf %38, %37 : vector<8x32xf32>
    %40 = arith.divf %38, %39 : vector<8x32xf32>
    %41 = arith.mulf %32, %4 : vector<8x32xf32>
    %42 = arith.mulf %26, %34 : vector<8x32xf32>
    %43 = arith.addf %41, %42 : vector<8x32xf32>
    %44 = math.tanh %43 : vector<8x32xf32>
    %45 = arith.mulf %40, %44 : vector<8x32xf32>
    %46 = vector.extract_strided_slice %20 {offsets = [0, 0], sizes = [8, 32], strides = [1, 1]} : vector<8x128xf32> to vector<8x32xf32>
    %47 = arith.negf %46 : vector<8x32xf32>
    %48 = math.exp %47 : vector<8x32xf32>
    %cst_16 = arith.constant 1.000000e+00 : f32
    %49 = vector.broadcast %cst_16 : f32 to vector<8x32xf32>
    %50 = arith.addf %49, %48 : vector<8x32xf32>
    %51 = arith.divf %49, %50 : vector<8x32xf32>
    %52 = vector.extract_strided_slice %20 {offsets = [0, 32], sizes = [8, 32], strides = [1, 1]} : vector<8x128xf32> to vector<8x32xf32>
    %53 = arith.negf %52 : vector<8x32xf32>
    %54 = math.exp %53 : vector<8x32xf32>
    %cst_17 = arith.constant 1.000000e+00 : f32
    %55 = vector.broadcast %cst_17 : f32 to vector<8x32xf32>
    %56 = arith.addf %55, %54 : vector<8x32xf32>
    %57 = arith.divf %55, %56 : vector<8x32xf32>
    %58 = vector.extract_strided_slice %20 {offsets = [0, 64], sizes = [8, 32], strides = [1, 1]} : vector<8x128xf32> to vector<8x32xf32>
    %59 = math.tanh %58 : vector<8x32xf32>
    %60 = vector.extract_strided_slice %20 {offsets = [0, 96], sizes = [8, 32], strides = [1, 1]} : vector<8x128xf32> to vector<8x32xf32>
    %61 = arith.negf %60 : vector<8x32xf32>
    %62 = math.exp %61 : vector<8x32xf32>
    %cst_18 = arith.constant 1.000000e+00 : f32
    %63 = vector.broadcast %cst_18 : f32 to vector<8x32xf32>
    %64 = arith.addf %63, %62 : vector<8x32xf32>
    %65 = arith.divf %63, %64 : vector<8x32xf32>
    %66 = arith.mulf %57, %6 : vector<8x32xf32>
    %67 = arith.mulf %51, %59 : vector<8x32xf32>
    %68 = arith.addf %66, %67 : vector<8x32xf32>
    %69 = math.tanh %68 : vector<8x32xf32>
    %70 = arith.mulf %65, %69 : vector<8x32xf32>
    %71 = tpu.concatenate %45, %70 in 0 : vector<8x32xf32>, vector<8x32xf32> -> vector<16x32xf32>
    %72 = arith.truncf %71 : vector<16x32xf32> to vector<16x32xbf16>
    %73 = arith.index_cast %c0_i32_7 : i32 to index
    %c0_19 = arith.constant 0 : index
    %c0_20 = arith.constant 0 : index
    %74 = vector.load %arg4[%73, %c0_19, %c0_20] : memref<8x16x32xbf16, #tpu.memory_space<vmem>>, vector<1x16x32xbf16>
    %75 = vector.shape_cast %74 : vector<1x16x32xbf16> to vector<16x32xbf16>
    %76 = vector.shape_cast %72 : vector<16x32xbf16> to vector<1x16x32xbf16>
    tpu.vector_store %arg4[%73, %c0_19, %c0_20], %76 {strides = array<i32>} : memref<8x16x32xbf16, #tpu.memory_space<vmem>>, vector<1x16x32xbf16>,
    %c1_i32 = arith.constant 1 : i32
    %c0_21 = arith.constant 0 : index
    %c0_22 = arith.constant 0 : index
    %77 = vector.load %arg3[%c0_21, %c0_22] : memref<32x128xbf16, #tpu.memory_space<vmem>>, vector<32x128xbf16>
    %78 = arith.index_cast %c1_i32 : i32 to index
    %c0_23 = arith.constant 0 : index
    %c0_24 = arith.constant 0 : index
    %79 = vector.load %arg2[%78, %c0_23, %c0_24] : memref<8x16x128xbf16, #tpu.memory_space<vmem>>, vector<1x16x128xbf16>
    %80 = vector.shape_cast %79 : vector<1x16x128xbf16> to vector<16x128xbf16>
    %81 = vector.extract_strided_slice %80 {offsets = [0, 0], sizes = [8, 128], strides = [1, 1]} : vector<16x128xbf16> to vector<8x128xbf16>
    %82 = arith.truncf %45 : vector<8x32xf32> to vector<8x32xbf16>
    %cst_25 = arith.constant dense<0.000000e+00> : vector<8x128xf32>
    %83 = tpu.matmul %82, %77, %cst_25 {dimension_numbers = #tpu.dot_dimension_numbers<[1], [0], [0], [1], [0, 0, 1, 1], [], []>} : vector<8x32xbf16>, vector<32x128xbf16>, vector<8x128xf32> -> vector<8x128xf32>
    %84 = arith.extf %81 : vector<8x128xbf16> to vector<8x128xf32>
    %85 = arith.addf %84, %83 : vector<8x128xf32>
    %86 = vector.extract_strided_slice %80 {offsets = [8, 0], sizes = [8, 128], strides = [1, 1]} : vector<16x128xbf16> to vector<8x128xbf16>
    %87 = arith.truncf %70 : vector<8x32xf32> to vector<8x32xbf16>
    %cst_26 = arith.constant dense<0.000000e+00> : vector<8x128xf32>
    %88 = tpu.matmul %87, %77, %cst_26 {dimension_numbers = #tpu.dot_dimension_numbers<[1], [0], [0], [1], [0, 0, 1, 1], [], []>} : vector<8x32xbf16>, vector<32x128xbf16>, vector<8x128xf32> -> vector<8x128xf32>
    %89 = arith.extf %86 : vector<8x128xbf16> to vector<8x128xf32>
    %90 = arith.addf %89, %88 : vector<8x128xf32>
    %91 = vector.extract_strided_slice %85 {offsets = [0, 0], sizes = [8, 32], strides = [1, 1]} : vector<8x128xf32> to vector<8x32xf32>
    %92 = arith.negf %91 : vector<8x32xf32>
    %93 = math.exp %92 : vector<8x32xf32>
    %cst_27 = arith.constant 1.000000e+00 : f32
    %94 = vector.broadcast %cst_27 : f32 to vector<8x32xf32>
    %95 = arith.addf %94, %93 : vector<8x32xf32>
    %96 = arith.divf %94, %95 : vector<8x32xf32>
    %97 = vector.extract_strided_slice %85 {offsets = [0, 32], sizes = [8, 32], strides = [1, 1]} : vector<8x128xf32> to vector<8x32xf32>
    %98 = arith.negf %97 : vector<8x32xf32>
    %99 = math.exp %98 : vector<8x32xf32>
    %cst_28 = arith.constant 1.000000e+00 : f32
    %100 = vector.broadcast %cst_28 : f32 to vector<8x32xf32>
    %101 = arith.addf %100, %99 : vector<8x32xf32>
    %102 = arith.divf %100, %101 : vector<8x32xf32>
    %103 = vector.extract_strided_slice %85 {offsets = [0, 64], sizes = [8, 32], strides = [1, 1]} : vector<8x128xf32> to vector<8x32xf32>
    %104 = math.tanh %103 : vector<8x32xf32>
    %105 = vector.extract_strided_slice %85 {offsets = [0, 96], sizes = [8, 32], strides = [1, 1]} : vector<8x128xf32> to vector<8x32xf32>
    %106 = arith.negf %105 : vector<8x32xf32>
    %107 = math.exp %106 : vector<8x32xf32>
    %cst_29 = arith.constant 1.000000e+00 : f32
    %108 = vector.broadcast %cst_29 : f32 to vector<8x32xf32>
    %109 = arith.addf %108, %107 : vector<8x32xf32>
    %110 = arith.divf %108, %109 : vector<8x32xf32>
    %111 = arith.mulf %102, %43 : vector<8x32xf32>
    %112 = arith.mulf %96, %104 : vector<8x32xf32>
    %113 = arith.addf %111, %112 : vector<8x32xf32>
    %114 = math.tanh %113 : vector<8x32xf32>
    %115 = arith.mulf %110, %114 : vector<8x32xf32>
    %116 = vector.extract_strided_slice %90 {offsets = [0, 0], sizes = [8, 32], strides = [1, 1]} : vector<8x128xf32> to vector<8x32xf32>
    %117 = arith.negf %116 : vector<8x32xf32>
    %118 = math.exp %117 : vector<8x32xf32>
    %cst_30 = arith.constant 1.000000e+00 : f32
    %119 = vector.broadcast %cst_30 : f32 to vector<8x32xf32>
    %120 = arith.addf %119, %118 : vector<8x32xf32>
    %121 = arith.divf %119, %120 : vector<8x32xf32>
    %122 = vector.extract_strided_slice %90 {offsets = [0, 32], sizes = [8, 32], strides = [1, 1]} : vector<8x128xf32> to vector<8x32xf32>
    %123 = arith.negf %122 : vector<8x32xf32>
    %124 = math.exp %123 : vector<8x32xf32>
    %cst_31 = arith.constant 1.000000e+00 : f32
    %125 = vector.broadcast %cst_31 : f32 to vector<8x32xf32>
    %126 = arith.addf %125, %124 : vector<8x32xf32>
    %127 = arith.divf %125, %126 : vector<8x32xf32>
    %128 = vector.extract_strided_slice %90 {offsets = [0, 64], sizes = [8, 32], strides = [1, 1]} : vector<8x128xf32> to vector<8x32xf32>
    %129 = math.tanh %128 : vector<8x32xf32>
    %130 = vector.extract_strided_slice %90 {offsets = [0, 96], sizes = [8, 32], strides = [1, 1]} : vector<8x128xf32> to vector<8x32xf32>
    %131 = arith.negf %130 : vector<8x32xf32>
    %132 = math.exp %131 : vector<8x32xf32>
    %cst_32 = arith.constant 1.000000e+00 : f32
    %133 = vector.broadcast %cst_32 : f32 to vector<8x32xf32>
    %134 = arith.addf %133, %132 : vector<8x32xf32>
    %135 = arith.divf %133, %134 : vector<8x32xf32>
    %136 = arith.mulf %127, %68 : vector<8x32xf32>
    %137 = arith.mulf %121, %129 : vector<8x32xf32>
    %138 = arith.addf %136, %137 : vector<8x32xf32>
    %139 = math.tanh %138 : vector<8x32xf32>
    %140 = arith.mulf %135, %139 : vector<8x32xf32>
    %141 = tpu.concatenate %115, %140 in 0 : vector<8x32xf32>, vector<8x32xf32> -> vector<16x32xf32>
    %142 = arith.truncf %141 : vector<16x32xf32> to vector<16x32xbf16>
    %143 = arith.index_cast %c1_i32 : i32 to index
    %c0_33 = arith.constant 0 : index
    %c0_34 = arith.constant 0 : index
    %144 = vector.load %arg4[%143, %c0_33, %c0_34] : memref<8x16x32xbf16, #tpu.memory_space<vmem>>, vector<1x16x32xbf16>
    %145 = vector.shape_cast %144 : vector<1x16x32xbf16> to vector<16x32xbf16>
    %146 = vector.shape_cast %142 : vector<16x32xbf16> to vector<1x16x32xbf16>
    tpu.vector_store %arg4[%143, %c0_33, %c0_34], %146 {strides = array<i32>} : memref<8x16x32xbf16, #tpu.memory_space<vmem>>, vector<1x16x32xbf16>,
    %c2_i32 = arith.constant 2 : i32
    %c0_35 = arith.constant 0 : index
    %c0_36 = arith.constant 0 : index
    %147 = vector.load %arg3[%c0_35, %c0_36] : memref<32x128xbf16, #tpu.memory_space<vmem>>, vector<32x128xbf16>
    %148 = arith.index_cast %c2_i32 : i32 to index
    %c0_37 = arith.constant 0 : index
    %c0_38 = arith.constant 0 : index
    %149 = vector.load %arg2[%148, %c0_37, %c0_38] : memref<8x16x128xbf16, #tpu.memory_space<vmem>>, vector<1x16x128xbf16>
    %150 = vector.shape_cast %149 : vector<1x16x128xbf16> to vector<16x128xbf16>
    %151 = vector.extract_strided_slice %150 {offsets = [0, 0], sizes = [8, 128], strides = [1, 1]} : vector<16x128xbf16> to vector<8x128xbf16>
    %152 = arith.truncf %115 : vector<8x32xf32> to vector<8x32xbf16>
    %cst_39 = arith.constant dense<0.000000e+00> : vector<8x128xf32>
    %153 = tpu.matmul %152, %147, %cst_39 {dimension_numbers = #tpu.dot_dimension_numbers<[1], [0], [0], [1], [0, 0, 1, 1], [], []>} : vector<8x32xbf16>, vector<32x128xbf16>, vector<8x128xf32> -> vector<8x128xf32>
    %154 = arith.extf %151 : vector<8x128xbf16> to vector<8x128xf32>
    %155 = arith.addf %154, %153 : vector<8x128xf32>
    %156 = vector.extract_strided_slice %150 {offsets = [8, 0], sizes = [8, 128], strides = [1, 1]} : vector<16x128xbf16> to vector<8x128xbf16>
    %157 = arith.truncf %140 : vector<8x32xf32> to vector<8x32xbf16>
    %cst_40 = arith.constant dense<0.000000e+00> : vector<8x128xf32>
    %158 = tpu.matmul %157, %147, %cst_40 {dimension_numbers = #tpu.dot_dimension_numbers<[1], [0], [0], [1], [0, 0, 1, 1], [], []>} : vector<8x32xbf16>, vector<32x128xbf16>, vector<8x128xf32> -> vector<8x128xf32>
    %159 = arith.extf %156 : vector<8x128xbf16> to vector<8x128xf32>
    %160 = arith.addf %159, %158 : vector<8x128xf32>
    %161 = vector.extract_strided_slice %155 {offsets = [0, 0], sizes = [8, 32], strides = [1, 1]} : vector<8x128xf32> to vector<8x32xf32>
    %162 = arith.negf %161 : vector<8x32xf32>
    %163 = math.exp %162 : vector<8x32xf32>
    %cst_41 = arith.constant 1.000000e+00 : f32
    %164 = vector.broadcast %cst_41 : f32 to vector<8x32xf32>
    %165 = arith.addf %164, %163 : vector<8x32xf32>
    %166 = arith.divf %164, %165 : vector<8x32xf32>
    %167 = vector.extract_strided_slice %155 {offsets = [0, 32], sizes = [8, 32], strides = [1, 1]} : vector<8x128xf32> to vector<8x32xf32>
    %168 = arith.negf %167 : vector<8x32xf32>
    %169 = math.exp %168 : vector<8x32xf32>
    %cst_42 = arith.constant 1.000000e+00 : f32
    %170 = vector.broadcast %cst_42 : f32 to vector<8x32xf32>
    %171 = arith.addf %170, %169 : vector<8x32xf32>
    %172 = arith.divf %170, %171 : vector<8x32xf32>
    %173 = vector.extract_strided_slice %155 {offsets = [0, 64], sizes = [8, 32], strides = [1, 1]} : vector<8x128xf32> to vector<8x32xf32>
    %174 = math.tanh %173 : vector<8x32xf32>
    %175 = vector.extract_strided_slice %155 {offsets = [0, 96], sizes = [8, 32], strides = [1, 1]} : vector<8x128xf32> to vector<8x32xf32>
    %176 = arith.negf %175 : vector<8x32xf32>
    %177 = math.exp %176 : vector<8x32xf32>
    %cst_43 = arith.constant 1.000000e+00 : f32
    %178 = vector.broadcast %cst_43 : f32 to vector<8x32xf32>
    %179 = arith.addf %178, %177 : vector<8x32xf32>
    %180 = arith.divf %178, %179 : vector<8x32xf32>
    %181 = arith.mulf %172, %113 : vector<8x32xf32>
    %182 = arith.mulf %166, %174 : vector<8x32xf32>
    %183 = arith.addf %181, %182 : vector<8x32xf32>
    %184 = math.tanh %183 : vector<8x32xf32>
    %185 = arith.mulf %180, %184 : vector<8x32xf32>
    %186 = vector.extract_strided_slice %160 {offsets = [0, 0], sizes = [8, 32], strides = [1, 1]} : vector<8x128xf32> to vector<8x32xf32>
    %187 = arith.negf %186 : vector<8x32xf32>
    %188 = math.exp %187 : vector<8x32xf32>
    %cst_44 = arith.constant 1.000000e+00 : f32
    %189 = vector.broadcast %cst_44 : f32 to vector<8x32xf32>
    %190 = arith.addf %189, %188 : vector<8x32xf32>
    %191 = arith.divf %189, %190 : vector<8x32xf32>
    %192 = vector.extract_strided_slice %160 {offsets = [0, 32], sizes = [8, 32], strides = [1, 1]} : vector<8x128xf32> to vector<8x32xf32>
    %193 = arith.negf %192 : vector<8x32xf32>
    %194 = math.exp %193 : vector<8x32xf32>
    %cst_45 = arith.constant 1.000000e+00 : f32
    %195 = vector.broadcast %cst_45 : f32 to vector<8x32xf32>
    %196 = arith.addf %195, %194 : vector<8x32xf32>
    %197 = arith.divf %195, %196 : vector<8x32xf32>
    %198 = vector.extract_strided_slice %160 {offsets = [0, 64], sizes = [8, 32], strides = [1, 1]} : vector<8x128xf32> to vector<8x32xf32>
    %199 = math.tanh %198 : vector<8x32xf32>
    %200 = vector.extract_strided_slice %160 {offsets = [0, 96], sizes = [8, 32], strides = [1, 1]} : vector<8x128xf32> to vector<8x32xf32>
    %201 = arith.negf %200 : vector<8x32xf32>
    %202 = math.exp %201 : vector<8x32xf32>
    %cst_46 = arith.constant 1.000000e+00 : f32
    %203 = vector.broadcast %cst_46 : f32 to vector<8x32xf32>
    %204 = arith.addf %203, %202 : vector<8x32xf32>
    %205 = arith.divf %203, %204 : vector<8x32xf32>
    %206 = arith.mulf %197, %138 : vector<8x32xf32>
    %207 = arith.mulf %191, %199 : vector<8x32xf32>
    %208 = arith.addf %206, %207 : vector<8x32xf32>
    %209 = math.tanh %208 : vector<8x32xf32>
    %210 = arith.mulf %205, %209 : vector<8x32xf32>
    %211 = tpu.concatenate %185, %210 in 0 : vector<8x32xf32>, vector<8x32xf32> -> vector<16x32xf32>
    %212 = arith.truncf %211 : vector<16x32xf32> to vector<16x32xbf16>
    %213 = arith.index_cast %c2_i32 : i32 to index
    %c0_47 = arith.constant 0 : index
    %c0_48 = arith.constant 0 : index
    %214 = vector.load %arg4[%213, %c0_47, %c0_48] : memref<8x16x32xbf16, #tpu.memory_space<vmem>>, vector<1x16x32xbf16>
    %215 = vector.shape_cast %214 : vector<1x16x32xbf16> to vector<16x32xbf16>
    %216 = vector.shape_cast %212 : vector<16x32xbf16> to vector<1x16x32xbf16>
    tpu.vector_store %arg4[%213, %c0_47, %c0_48], %216 {strides = array<i32>} : memref<8x16x32xbf16, #tpu.memory_space<vmem>>, vector<1x16x32xbf16>,
    %c3_i32 = arith.constant 3 : i32
    %c0_49 = arith.constant 0 : index
    %c0_50 = arith.constant 0 : index
    %217 = vector.load %arg3[%c0_49, %c0_50] : memref<32x128xbf16, #tpu.memory_space<vmem>>, vector<32x128xbf16>
    %218 = arith.index_cast %c3_i32 : i32 to index
    %c0_51 = arith.constant 0 : index
    %c0_52 = arith.constant 0 : index
    %219 = vector.load %arg2[%218, %c0_51, %c0_52] : memref<8x16x128xbf16, #tpu.memory_space<vmem>>, vector<1x16x128xbf16>
    %220 = vector.shape_cast %219 : vector<1x16x128xbf16> to vector<16x128xbf16>
    %221 = vector.extract_strided_slice %220 {offsets = [0, 0], sizes = [8, 128], strides = [1, 1]} : vector<16x128xbf16> to vector<8x128xbf16>
    %222 = arith.truncf %185 : vector<8x32xf32> to vector<8x32xbf16>
    %cst_53 = arith.constant dense<0.000000e+00> : vector<8x128xf32>
    %223 = tpu.matmul %222, %217, %cst_53 {dimension_numbers = #tpu.dot_dimension_numbers<[1], [0], [0], [1], [0, 0, 1, 1], [], []>} : vector<8x32xbf16>, vector<32x128xbf16>, vector<8x128xf32> -> vector<8x128xf32>
    %224 = arith.extf %221 : vector<8x128xbf16> to vector<8x128xf32>
    %225 = arith.addf %224, %223 : vector<8x128xf32>
    %226 = vector.extract_strided_slice %220 {offsets = [8, 0], sizes = [8, 128], strides = [1, 1]} : vector<16x128xbf16> to vector<8x128xbf16>
    %227 = arith.truncf %210 : vector<8x32xf32> to vector<8x32xbf16>
    %cst_54 = arith.constant dense<0.000000e+00> : vector<8x128xf32>
    %228 = tpu.matmul %227, %217, %cst_54 {dimension_numbers = #tpu.dot_dimension_numbers<[1], [0], [0], [1], [0, 0, 1, 1], [], []>} : vector<8x32xbf16>, vector<32x128xbf16>, vector<8x128xf32> -> vector<8x128xf32>
    %229 = arith.extf %226 : vector<8x128xbf16> to vector<8x128xf32>
    %230 = arith.addf %229, %228 : vector<8x128xf32>
    %231 = vector.extract_strided_slice %225 {offsets = [0, 0], sizes = [8, 32], strides = [1, 1]} : vector<8x128xf32> to vector<8x32xf32>
    %232 = arith.negf %231 : vector<8x32xf32>
    %233 = math.exp %232 : vector<8x32xf32>
    %cst_55 = arith.constant 1.000000e+00 : f32
    %234 = vector.broadcast %cst_55 : f32 to vector<8x32xf32>
    %235 = arith.addf %234, %233 : vector<8x32xf32>
    %236 = arith.divf %234, %235 : vector<8x32xf32>
    %237 = vector.extract_strided_slice %225 {offsets = [0, 32], sizes = [8, 32], strides = [1, 1]} : vector<8x128xf32> to vector<8x32xf32>
    %238 = arith.negf %237 : vector<8x32xf32>
    %239 = math.exp %238 : vector<8x32xf32>
    %cst_56 = arith.constant 1.000000e+00 : f32
    %240 = vector.broadcast %cst_56 : f32 to vector<8x32xf32>
    %241 = arith.addf %240, %239 : vector<8x32xf32>
    %242 = arith.divf %240, %241 : vector<8x32xf32>
    %243 = vector.extract_strided_slice %225 {offsets = [0, 64], sizes = [8, 32], strides = [1, 1]} : vector<8x128xf32> to vector<8x32xf32>
    %244 = math.tanh %243 : vector<8x32xf32>
    %245 = vector.extract_strided_slice %225 {offsets = [0, 96], sizes = [8, 32], strides = [1, 1]} : vector<8x128xf32> to vector<8x32xf32>
    %246 = arith.negf %245 : vector<8x32xf32>
    %247 = math.exp %246 : vector<8x32xf32>
    %cst_57 = arith.constant 1.000000e+00 : f32
    %248 = vector.broadcast %cst_57 : f32 to vector<8x32xf32>
    %249 = arith.addf %248, %247 : vector<8x32xf32>
    %250 = arith.divf %248, %249 : vector<8x32xf32>
    %251 = arith.mulf %242, %183 : vector<8x32xf32>
    %252 = arith.mulf %236, %244 : vector<8x32xf32>
    %253 = arith.addf %251, %252 : vector<8x32xf32>
    %254 = math.tanh %253 : vector<8x32xf32>
    %255 = arith.mulf %250, %254 : vector<8x32xf32>
    %256 = vector.extract_strided_slice %230 {offsets = [0, 0], sizes = [8, 32], strides = [1, 1]} : vector<8x128xf32> to vector<8x32xf32>
    %257 = arith.negf %256 : vector<8x32xf32>
    %258 = math.exp %257 : vector<8x32xf32>
    %cst_58 = arith.constant 1.000000e+00 : f32
    %259 = vector.broadcast %cst_58 : f32 to vector<8x32xf32>
    %260 = arith.addf %259, %258 : vector<8x32xf32>
    %261 = arith.divf %259, %260 : vector<8x32xf32>
    %262 = vector.extract_strided_slice %230 {offsets = [0, 32], sizes = [8, 32], strides = [1, 1]} : vector<8x128xf32> to vector<8x32xf32>
    %263 = arith.negf %262 : vector<8x32xf32>
    %264 = math.exp %263 : vector<8x32xf32>
    %cst_59 = arith.constant 1.000000e+00 : f32
    %265 = vector.broadcast %cst_59 : f32 to vector<8x32xf32>
    %266 = arith.addf %265, %264 : vector<8x32xf32>
    %267 = arith.divf %265, %266 : vector<8x32xf32>
    %268 = vector.extract_strided_slice %230 {offsets = [0, 64], sizes = [8, 32], strides = [1, 1]} : vector<8x128xf32> to vector<8x32xf32>
    %269 = math.tanh %268 : vector<8x32xf32>
    %270 = vector.extract_strided_slice %230 {offsets = [0, 96], sizes = [8, 32], strides = [1, 1]} : vector<8x128xf32> to vector<8x32xf32>
    %271 = arith.negf %270 : vector<8x32xf32>
    %272 = math.exp %271 : vector<8x32xf32>
    %cst_60 = arith.constant 1.000000e+00 : f32
    %273 = vector.broadcast %cst_60 : f32 to vector<8x32xf32>
    %274 = arith.addf %273, %272 : vector<8x32xf32>
    %275 = arith.divf %273, %274 : vector<8x32xf32>
    %276 = arith.mulf %267, %208 : vector<8x32xf32>
    %277 = arith.mulf %261, %269 : vector<8x32xf32>
    %278 = arith.addf %276, %277 : vector<8x32xf32>
    %279 = math.tanh %278 : vector<8x32xf32>
    %280 = arith.mulf %275, %279 : vector<8x32xf32>
    %281 = tpu.concatenate %255, %280 in 0 : vector<8x32xf32>, vector<8x32xf32> -> vector<16x32xf32>
    %282 = arith.truncf %281 : vector<16x32xf32> to vector<16x32xbf16>
    %283 = arith.index_cast %c3_i32 : i32 to index
    %c0_61 = arith.constant 0 : index
    %c0_62 = arith.constant 0 : index
    %284 = vector.load %arg4[%283, %c0_61, %c0_62] : memref<8x16x32xbf16, #tpu.memory_space<vmem>>, vector<1x16x32xbf16>
    %285 = vector.shape_cast %284 : vector<1x16x32xbf16> to vector<16x32xbf16>
    %286 = vector.shape_cast %282 : vector<16x32xbf16> to vector<1x16x32xbf16>
    tpu.vector_store %arg4[%283, %c0_61, %c0_62], %286 {strides = array<i32>} : memref<8x16x32xbf16, #tpu.memory_space<vmem>>, vector<1x16x32xbf16>,
    %c4_i32 = arith.constant 4 : i32
    %c0_63 = arith.constant 0 : index
    %c0_64 = arith.constant 0 : index
    %287 = vector.load %arg3[%c0_63, %c0_64] : memref<32x128xbf16, #tpu.memory_space<vmem>>, vector<32x128xbf16>
    %288 = arith.index_cast %c4_i32 : i32 to index
    %c0_65 = arith.constant 0 : index
    %c0_66 = arith.constant 0 : index
    %289 = vector.load %arg2[%288, %c0_65, %c0_66] : memref<8x16x128xbf16, #tpu.memory_space<vmem>>, vector<1x16x128xbf16>
    %290 = vector.shape_cast %289 : vector<1x16x128xbf16> to vector<16x128xbf16>
    %291 = vector.extract_strided_slice %290 {offsets = [0, 0], sizes = [8, 128], strides = [1, 1]} : vector<16x128xbf16> to vector<8x128xbf16>
    %292 = arith.truncf %255 : vector<8x32xf32> to vector<8x32xbf16>
    %cst_67 = arith.constant dense<0.000000e+00> : vector<8x128xf32>
    %293 = tpu.matmul %292, %287, %cst_67 {dimension_numbers = #tpu.dot_dimension_numbers<[1], [0], [0], [1], [0, 0, 1, 1], [], []>} : vector<8x32xbf16>, vector<32x128xbf16>, vector<8x128xf32> -> vector<8x128xf32>
    %294 = arith.extf %291 : vector<8x128xbf16> to vector<8x128xf32>
    %295 = arith.addf %294, %293 : vector<8x128xf32>
    %296 = vector.extract_strided_slice %290 {offsets = [8, 0], sizes = [8, 128], strides = [1, 1]} : vector<16x128xbf16> to vector<8x128xbf16>
    %297 = arith.truncf %280 : vector<8x32xf32> to vector<8x32xbf16>
    %cst_68 = arith.constant dense<0.000000e+00> : vector<8x128xf32>
    %298 = tpu.matmul %297, %287, %cst_68 {dimension_numbers = #tpu.dot_dimension_numbers<[1], [0], [0], [1], [0, 0, 1, 1], [], []>} : vector<8x32xbf16>, vector<32x128xbf16>, vector<8x128xf32> -> vector<8x128xf32>
    %299 = arith.extf %296 : vector<8x128xbf16> to vector<8x128xf32>
    %300 = arith.addf %299, %298 : vector<8x128xf32>
    %301 = vector.extract_strided_slice %295 {offsets = [0, 0], sizes = [8, 32], strides = [1, 1]} : vector<8x128xf32> to vector<8x32xf32>
    %302 = arith.negf %301 : vector<8x32xf32>
    %303 = math.exp %302 : vector<8x32xf32>
    %cst_69 = arith.constant 1.000000e+00 : f32
    %304 = vector.broadcast %cst_69 : f32 to vector<8x32xf32>
    %305 = arith.addf %304, %303 : vector<8x32xf32>
    %306 = arith.divf %304, %305 : vector<8x32xf32>
    %307 = vector.extract_strided_slice %295 {offsets = [0, 32], sizes = [8, 32], strides = [1, 1]} : vector<8x128xf32> to vector<8x32xf32>
    %308 = arith.negf %307 : vector<8x32xf32>
    %309 = math.exp %308 : vector<8x32xf32>
    %cst_70 = arith.constant 1.000000e+00 : f32
    %310 = vector.broadcast %cst_70 : f32 to vector<8x32xf32>
    %311 = arith.addf %310, %309 : vector<8x32xf32>
    %312 = arith.divf %310, %311 : vector<8x32xf32>
    %313 = vector.extract_strided_slice %295 {offsets = [0, 64], sizes = [8, 32], strides = [1, 1]} : vector<8x128xf32> to vector<8x32xf32>
    %314 = math.tanh %313 : vector<8x32xf32>
    %315 = vector.extract_strided_slice %295 {offsets = [0, 96], sizes = [8, 32], strides = [1, 1]} : vector<8x128xf32> to vector<8x32xf32>
    %316 = arith.negf %315 : vector<8x32xf32>
    %317 = math.exp %316 : vector<8x32xf32>
    %cst_71 = arith.constant 1.000000e+00 : f32
    %318 = vector.broadcast %cst_71 : f32 to vector<8x32xf32>
    %319 = arith.addf %318, %317 : vector<8x32xf32>
    %320 = arith.divf %318, %319 : vector<8x32xf32>
    %321 = arith.mulf %312, %253 : vector<8x32xf32>
    %322 = arith.mulf %306, %314 : vector<8x32xf32>
    %323 = arith.addf %321, %322 : vector<8x32xf32>
    %324 = math.tanh %323 : vector<8x32xf32>
    %325 = arith.mulf %320, %324 : vector<8x32xf32>
    %326 = vector.extract_strided_slice %300 {offsets = [0, 0], sizes = [8, 32], strides = [1, 1]} : vector<8x128xf32> to vector<8x32xf32>
    %327 = arith.negf %326 : vector<8x32xf32>
    %328 = math.exp %327 : vector<8x32xf32>
    %cst_72 = arith.constant 1.000000e+00 : f32
    %329 = vector.broadcast %cst_72 : f32 to vector<8x32xf32>
    %330 = arith.addf %329, %328 : vector<8x32xf32>
    %331 = arith.divf %329, %330 : vector<8x32xf32>
    %332 = vector.extract_strided_slice %300 {offsets = [0, 32], sizes = [8, 32], strides = [1, 1]} : vector<8x128xf32> to vector<8x32xf32>
    %333 = arith.negf %332 : vector<8x32xf32>
    %334 = math.exp %333 : vector<8x32xf32>
    %cst_73 = arith.constant 1.000000e+00 : f32
    %335 = vector.broadcast %cst_73 : f32 to vector<8x32xf32>
    %336 = arith.addf %335, %334 : vector<8x32xf32>
    %337 = arith.divf %335, %336 : vector<8x32xf32>
    %338 = vector.extract_strided_slice %300 {offsets = [0, 64], sizes = [8, 32], strides = [1, 1]} : vector<8x128xf32> to vector<8x32xf32>
    %339 = math.tanh %338 : vector<8x32xf32>
    %340 = vector.extract_strided_slice %300 {offsets = [0, 96], sizes = [8, 32], strides = [1, 1]} : vector<8x128xf32> to vector<8x32xf32>
    %341 = arith.negf %340 : vector<8x32xf32>
    %342 = math.exp %341 : vector<8x32xf32>
    %cst_74 = arith.constant 1.000000e+00 : f32
    %343 = vector.broadcast %cst_74 : f32 to vector<8x32xf32>
    %344 = arith.addf %343, %342 : vector<8x32xf32>
    %345 = arith.divf %343, %344 : vector<8x32xf32>
    %346 = arith.mulf %337, %278 : vector<8x32xf32>
    %347 = arith.mulf %331, %339 : vector<8x32xf32>
    %348 = arith.addf %346, %347 : vector<8x32xf32>
    %349 = math.tanh %348 : vector<8x32xf32>
    %350 = arith.mulf %345, %349 : vector<8x32xf32>
    %351 = tpu.concatenate %325, %350 in 0 : vector<8x32xf32>, vector<8x32xf32> -> vector<16x32xf32>
    %352 = arith.truncf %351 : vector<16x32xf32> to vector<16x32xbf16>
    %353 = arith.index_cast %c4_i32 : i32 to index
    %c0_75 = arith.constant 0 : index
    %c0_76 = arith.constant 0 : index
    %354 = vector.load %arg4[%353, %c0_75, %c0_76] : memref<8x16x32xbf16, #tpu.memory_space<vmem>>, vector<1x16x32xbf16>
    %355 = vector.shape_cast %354 : vector<1x16x32xbf16> to vector<16x32xbf16>
    %356 = vector.shape_cast %352 : vector<16x32xbf16> to vector<1x16x32xbf16>
    tpu.vector_store %arg4[%353, %c0_75, %c0_76], %356 {strides = array<i32>} : memref<8x16x32xbf16, #tpu.memory_space<vmem>>, vector<1x16x32xbf16>,
    %c5_i32 = arith.constant 5 : i32
    %c0_77 = arith.constant 0 : index
    %c0_78 = arith.constant 0 : index
    %357 = vector.load %arg3[%c0_77, %c0_78] : memref<32x128xbf16, #tpu.memory_space<vmem>>, vector<32x128xbf16>
    %358 = arith.index_cast %c5_i32 : i32 to index
    %c0_79 = arith.constant 0 : index
    %c0_80 = arith.constant 0 : index
    %359 = vector.load %arg2[%358, %c0_79, %c0_80] : memref<8x16x128xbf16, #tpu.memory_space<vmem>>, vector<1x16x128xbf16>
    %360 = vector.shape_cast %359 : vector<1x16x128xbf16> to vector<16x128xbf16>
    %361 = vector.extract_strided_slice %360 {offsets = [0, 0], sizes = [8, 128], strides = [1, 1]} : vector<16x128xbf16> to vector<8x128xbf16>
    %362 = arith.truncf %325 : vector<8x32xf32> to vector<8x32xbf16>
    %cst_81 = arith.constant dense<0.000000e+00> : vector<8x128xf32>
    %363 = tpu.matmul %362, %357, %cst_81 {dimension_numbers = #tpu.dot_dimension_numbers<[1], [0], [0], [1], [0, 0, 1, 1], [], []>} : vector<8x32xbf16>, vector<32x128xbf16>, vector<8x128xf32> -> vector<8x128xf32>
    %364 = arith.extf %361 : vector<8x128xbf16> to vector<8x128xf32>
    %365 = arith.addf %364, %363 : vector<8x128xf32>
    %366 = vector.extract_strided_slice %360 {offsets = [8, 0], sizes = [8, 128], strides = [1, 1]} : vector<16x128xbf16> to vector<8x128xbf16>
    %367 = arith.truncf %350 : vector<8x32xf32> to vector<8x32xbf16>
    %cst_82 = arith.constant dense<0.000000e+00> : vector<8x128xf32>
    %368 = tpu.matmul %367, %357, %cst_82 {dimension_numbers = #tpu.dot_dimension_numbers<[1], [0], [0], [1], [0, 0, 1, 1], [], []>} : vector<8x32xbf16>, vector<32x128xbf16>, vector<8x128xf32> -> vector<8x128xf32>
    %369 = arith.extf %366 : vector<8x128xbf16> to vector<8x128xf32>
    %370 = arith.addf %369, %368 : vector<8x128xf32>
    %371 = vector.extract_strided_slice %365 {offsets = [0, 0], sizes = [8, 32], strides = [1, 1]} : vector<8x128xf32> to vector<8x32xf32>
    %372 = arith.negf %371 : vector<8x32xf32>
    %373 = math.exp %372 : vector<8x32xf32>
    %cst_83 = arith.constant 1.000000e+00 : f32
    %374 = vector.broadcast %cst_83 : f32 to vector<8x32xf32>
    %375 = arith.addf %374, %373 : vector<8x32xf32>
    %376 = arith.divf %374, %375 : vector<8x32xf32>
    %377 = vector.extract_strided_slice %365 {offsets = [0, 32], sizes = [8, 32], strides = [1, 1]} : vector<8x128xf32> to vector<8x32xf32>
    %378 = arith.negf %377 : vector<8x32xf32>
    %379 = math.exp %378 : vector<8x32xf32>
    %cst_84 = arith.constant 1.000000e+00 : f32
    %380 = vector.broadcast %cst_84 : f32 to vector<8x32xf32>
    %381 = arith.addf %380, %379 : vector<8x32xf32>
    %382 = arith.divf %380, %381 : vector<8x32xf32>
    %383 = vector.extract_strided_slice %365 {offsets = [0, 64], sizes = [8, 32], strides = [1, 1]} : vector<8x128xf32> to vector<8x32xf32>
    %384 = math.tanh %383 : vector<8x32xf32>
    %385 = vector.extract_strided_slice %365 {offsets = [0, 96], sizes = [8, 32], strides = [1, 1]} : vector<8x128xf32> to vector<8x32xf32>
    %386 = arith.negf %385 : vector<8x32xf32>
    %387 = math.exp %386 : vector<8x32xf32>
    %cst_85 = arith.constant 1.000000e+00 : f32
    %388 = vector.broadcast %cst_85 : f32 to vector<8x32xf32>
    %389 = arith.addf %388, %387 : vector<8x32xf32>
    %390 = arith.divf %388, %389 : vector<8x32xf32>
    %391 = arith.mulf %382, %323 : vector<8x32xf32>
    %392 = arith.mulf %376, %384 : vector<8x32xf32>
    %393 = arith.addf %391, %392 : vector<8x32xf32>
    %394 = math.tanh %393 : vector<8x32xf32>
    %395 = arith.mulf %390, %394 : vector<8x32xf32>
    %396 = vector.extract_strided_slice %370 {offsets = [0, 0], sizes = [8, 32], strides = [1, 1]} : vector<8x128xf32> to vector<8x32xf32>
    %397 = arith.negf %396 : vector<8x32xf32>
    %398 = math.exp %397 : vector<8x32xf32>
    %cst_86 = arith.constant 1.000000e+00 : f32
    %399 = vector.broadcast %cst_86 : f32 to vector<8x32xf32>
    %400 = arith.addf %399, %398 : vector<8x32xf32>
    %401 = arith.divf %399, %400 : vector<8x32xf32>
    %402 = vector.extract_strided_slice %370 {offsets = [0, 32], sizes = [8, 32], strides = [1, 1]} : vector<8x128xf32> to vector<8x32xf32>
    %403 = arith.negf %402 : vector<8x32xf32>
    %404 = math.exp %403 : vector<8x32xf32>
    %cst_87 = arith.constant 1.000000e+00 : f32
    %405 = vector.broadcast %cst_87 : f32 to vector<8x32xf32>
    %406 = arith.addf %405, %404 : vector<8x32xf32>
    %407 = arith.divf %405, %406 : vector<8x32xf32>
    %408 = vector.extract_strided_slice %370 {offsets = [0, 64], sizes = [8, 32], strides = [1, 1]} : vector<8x128xf32> to vector<8x32xf32>
    %409 = math.tanh %408 : vector<8x32xf32>
    %410 = vector.extract_strided_slice %370 {offsets = [0, 96], sizes = [8, 32], strides = [1, 1]} : vector<8x128xf32> to vector<8x32xf32>
    %411 = arith.negf %410 : vector<8x32xf32>
    %412 = math.exp %411 : vector<8x32xf32>
    %cst_88 = arith.constant 1.000000e+00 : f32
    %413 = vector.broadcast %cst_88 : f32 to vector<8x32xf32>
    %414 = arith.addf %413, %412 : vector<8x32xf32>
    %415 = arith.divf %413, %414 : vector<8x32xf32>
    %416 = arith.mulf %407, %348 : vector<8x32xf32>
    %417 = arith.mulf %401, %409 : vector<8x32xf32>
    %418 = arith.addf %416, %417 : vector<8x32xf32>
    %419 = math.tanh %418 : vector<8x32xf32>
    %420 = arith.mulf %415, %419 : vector<8x32xf32>
    %421 = tpu.concatenate %395, %420 in 0 : vector<8x32xf32>, vector<8x32xf32> -> vector<16x32xf32>
    %422 = arith.truncf %421 : vector<16x32xf32> to vector<16x32xbf16>
    %423 = arith.index_cast %c5_i32 : i32 to index
    %c0_89 = arith.constant 0 : index
    %c0_90 = arith.constant 0 : index
    %424 = vector.load %arg4[%423, %c0_89, %c0_90] : memref<8x16x32xbf16, #tpu.memory_space<vmem>>, vector<1x16x32xbf16>
    %425 = vector.shape_cast %424 : vector<1x16x32xbf16> to vector<16x32xbf16>
    %426 = vector.shape_cast %422 : vector<16x32xbf16> to vector<1x16x32xbf16>
    tpu.vector_store %arg4[%423, %c0_89, %c0_90], %426 {strides = array<i32>} : memref<8x16x32xbf16, #tpu.memory_space<vmem>>, vector<1x16x32xbf16>,
    %c6_i32 = arith.constant 6 : i32
    %c0_91 = arith.constant 0 : index
    %c0_92 = arith.constant 0 : index
    %427 = vector.load %arg3[%c0_91, %c0_92] : memref<32x128xbf16, #tpu.memory_space<vmem>>, vector<32x128xbf16>
    %428 = arith.index_cast %c6_i32 : i32 to index
    %c0_93 = arith.constant 0 : index
    %c0_94 = arith.constant 0 : index
    %429 = vector.load %arg2[%428, %c0_93, %c0_94] : memref<8x16x128xbf16, #tpu.memory_space<vmem>>, vector<1x16x128xbf16>
    %430 = vector.shape_cast %429 : vector<1x16x128xbf16> to vector<16x128xbf16>
    %431 = vector.extract_strided_slice %430 {offsets = [0, 0], sizes = [8, 128], strides = [1, 1]} : vector<16x128xbf16> to vector<8x128xbf16>
    %432 = arith.truncf %395 : vector<8x32xf32> to vector<8x32xbf16>
    %cst_95 = arith.constant dense<0.000000e+00> : vector<8x128xf32>
    %433 = tpu.matmul %432, %427, %cst_95 {dimension_numbers = #tpu.dot_dimension_numbers<[1], [0], [0], [1], [0, 0, 1, 1], [], []>} : vector<8x32xbf16>, vector<32x128xbf16>, vector<8x128xf32> -> vector<8x128xf32>
    %434 = arith.extf %431 : vector<8x128xbf16> to vector<8x128xf32>
    %435 = arith.addf %434, %433 : vector<8x128xf32>
    %436 = vector.extract_strided_slice %430 {offsets = [8, 0], sizes = [8, 128], strides = [1, 1]} : vector<16x128xbf16> to vector<8x128xbf16>
    %437 = arith.truncf %420 : vector<8x32xf32> to vector<8x32xbf16>
    %cst_96 = arith.constant dense<0.000000e+00> : vector<8x128xf32>
    %438 = tpu.matmul %437, %427, %cst_96 {dimension_numbers = #tpu.dot_dimension_numbers<[1], [0], [0], [1], [0, 0, 1, 1], [], []>} : vector<8x32xbf16>, vector<32x128xbf16>, vector<8x128xf32> -> vector<8x128xf32>
    %439 = arith.extf %436 : vector<8x128xbf16> to vector<8x128xf32>
    %440 = arith.addf %439, %438 : vector<8x128xf32>
    %441 = vector.extract_strided_slice %435 {offsets = [0, 0], sizes = [8, 32], strides = [1, 1]} : vector<8x128xf32> to vector<8x32xf32>
    %442 = arith.negf %441 : vector<8x32xf32>
    %443 = math.exp %442 : vector<8x32xf32>
    %cst_97 = arith.constant 1.000000e+00 : f32
    %444 = vector.broadcast %cst_97 : f32 to vector<8x32xf32>
    %445 = arith.addf %444, %443 : vector<8x32xf32>
    %446 = arith.divf %444, %445 : vector<8x32xf32>
    %447 = vector.extract_strided_slice %435 {offsets = [0, 32], sizes = [8, 32], strides = [1, 1]} : vector<8x128xf32> to vector<8x32xf32>
    %448 = arith.negf %447 : vector<8x32xf32>
    %449 = math.exp %448 : vector<8x32xf32>
    %cst_98 = arith.constant 1.000000e+00 : f32
    %450 = vector.broadcast %cst_98 : f32 to vector<8x32xf32>
    %451 = arith.addf %450, %449 : vector<8x32xf32>
    %452 = arith.divf %450, %451 : vector<8x32xf32>
    %453 = vector.extract_strided_slice %435 {offsets = [0, 64], sizes = [8, 32], strides = [1, 1]} : vector<8x128xf32> to vector<8x32xf32>
    %454 = math.tanh %453 : vector<8x32xf32>
    %455 = vector.extract_strided_slice %435 {offsets = [0, 96], sizes = [8, 32], strides = [1, 1]} : vector<8x128xf32> to vector<8x32xf32>
    %456 = arith.negf %455 : vector<8x32xf32>
    %457 = math.exp %456 : vector<8x32xf32>
    %cst_99 = arith.constant 1.000000e+00 : f32
    %458 = vector.broadcast %cst_99 : f32 to vector<8x32xf32>
    %459 = arith.addf %458, %457 : vector<8x32xf32>
    %460 = arith.divf %458, %459 : vector<8x32xf32>
    %461 = arith.mulf %452, %393 : vector<8x32xf32>
    %462 = arith.mulf %446, %454 : vector<8x32xf32>
    %463 = arith.addf %461, %462 : vector<8x32xf32>
    %464 = math.tanh %463 : vector<8x32xf32>
    %465 = arith.mulf %460, %464 : vector<8x32xf32>
    %466 = vector.extract_strided_slice %440 {offsets = [0, 0], sizes = [8, 32], strides = [1, 1]} : vector<8x128xf32> to vector<8x32xf32>
    %467 = arith.negf %466 : vector<8x32xf32>
    %468 = math.exp %467 : vector<8x32xf32>
    %cst_100 = arith.constant 1.000000e+00 : f32
    %469 = vector.broadcast %cst_100 : f32 to vector<8x32xf32>
    %470 = arith.addf %469, %468 : vector<8x32xf32>
    %471 = arith.divf %469, %470 : vector<8x32xf32>
    %472 = vector.extract_strided_slice %440 {offsets = [0, 32], sizes = [8, 32], strides = [1, 1]} : vector<8x128xf32> to vector<8x32xf32>
    %473 = arith.negf %472 : vector<8x32xf32>
    %474 = math.exp %473 : vector<8x32xf32>
    %cst_101 = arith.constant 1.000000e+00 : f32
    %475 = vector.broadcast %cst_101 : f32 to vector<8x32xf32>
    %476 = arith.addf %475, %474 : vector<8x32xf32>
    %477 = arith.divf %475, %476 : vector<8x32xf32>
    %478 = vector.extract_strided_slice %440 {offsets = [0, 64], sizes = [8, 32], strides = [1, 1]} : vector<8x128xf32> to vector<8x32xf32>
    %479 = math.tanh %478 : vector<8x32xf32>
    %480 = vector.extract_strided_slice %440 {offsets = [0, 96], sizes = [8, 32], strides = [1, 1]} : vector<8x128xf32> to vector<8x32xf32>
    %481 = arith.negf %480 : vector<8x32xf32>
    %482 = math.exp %481 : vector<8x32xf32>
    %cst_102 = arith.constant 1.000000e+00 : f32
    %483 = vector.broadcast %cst_102 : f32 to vector<8x32xf32>
    %484 = arith.addf %483, %482 : vector<8x32xf32>
    %485 = arith.divf %483, %484 : vector<8x32xf32>
    %486 = arith.mulf %477, %418 : vector<8x32xf32>
    %487 = arith.mulf %471, %479 : vector<8x32xf32>
    %488 = arith.addf %486, %487 : vector<8x32xf32>
    %489 = math.tanh %488 : vector<8x32xf32>
    %490 = arith.mulf %485, %489 : vector<8x32xf32>
    %491 = tpu.concatenate %465, %490 in 0 : vector<8x32xf32>, vector<8x32xf32> -> vector<16x32xf32>
    %492 = arith.truncf %491 : vector<16x32xf32> to vector<16x32xbf16>
    %493 = arith.index_cast %c6_i32 : i32 to index
    %c0_103 = arith.constant 0 : index
    %c0_104 = arith.constant 0 : index
    %494 = vector.load %arg4[%493, %c0_103, %c0_104] : memref<8x16x32xbf16, #tpu.memory_space<vmem>>, vector<1x16x32xbf16>
    %495 = vector.shape_cast %494 : vector<1x16x32xbf16> to vector<16x32xbf16>
    %496 = vector.shape_cast %492 : vector<16x32xbf16> to vector<1x16x32xbf16>
    tpu.vector_store %arg4[%493, %c0_103, %c0_104], %496 {strides = array<i32>} : memref<8x16x32xbf16, #tpu.memory_space<vmem>>, vector<1x16x32xbf16>,
    %c7_i32 = arith.constant 7 : i32
    %c0_105 = arith.constant 0 : index
    %c0_106 = arith.constant 0 : index
    %497 = vector.load %arg3[%c0_105, %c0_106] : memref<32x128xbf16, #tpu.memory_space<vmem>>, vector<32x128xbf16>
    %498 = arith.index_cast %c7_i32 : i32 to index
    %c0_107 = arith.constant 0 : index
    %c0_108 = arith.constant 0 : index
    %499 = vector.load %arg2[%498, %c0_107, %c0_108] : memref<8x16x128xbf16, #tpu.memory_space<vmem>>, vector<1x16x128xbf16>
    %500 = vector.shape_cast %499 : vector<1x16x128xbf16> to vector<16x128xbf16>
    %501 = vector.extract_strided_slice %500 {offsets = [0, 0], sizes = [8, 128], strides = [1, 1]} : vector<16x128xbf16> to vector<8x128xbf16>
    %502 = arith.truncf %465 : vector<8x32xf32> to vector<8x32xbf16>
    %cst_109 = arith.constant dense<0.000000e+00> : vector<8x128xf32>
    %503 = tpu.matmul %502, %497, %cst_109 {dimension_numbers = #tpu.dot_dimension_numbers<[1], [0], [0], [1], [0, 0, 1, 1], [], []>} : vector<8x32xbf16>, vector<32x128xbf16>, vector<8x128xf32> -> vector<8x128xf32>
    %504 = arith.extf %501 : vector<8x128xbf16> to vector<8x128xf32>
    %505 = arith.addf %504, %503 : vector<8x128xf32>
    %506 = vector.extract_strided_slice %500 {offsets = [8, 0], sizes = [8, 128], strides = [1, 1]} : vector<16x128xbf16> to vector<8x128xbf16>
    %507 = arith.truncf %490 : vector<8x32xf32> to vector<8x32xbf16>
    %cst_110 = arith.constant dense<0.000000e+00> : vector<8x128xf32>
    %508 = tpu.matmul %507, %497, %cst_110 {dimension_numbers = #tpu.dot_dimension_numbers<[1], [0], [0], [1], [0, 0, 1, 1], [], []>} : vector<8x32xbf16>, vector<32x128xbf16>, vector<8x128xf32> -> vector<8x128xf32>
    %509 = arith.extf %506 : vector<8x128xbf16> to vector<8x128xf32>
    %510 = arith.addf %509, %508 : vector<8x128xf32>
    %511 = vector.extract_strided_slice %505 {offsets = [0, 0], sizes = [8, 32], strides = [1, 1]} : vector<8x128xf32> to vector<8x32xf32>
    %512 = arith.negf %511 : vector<8x32xf32>
    %513 = math.exp %512 : vector<8x32xf32>
    %cst_111 = arith.constant 1.000000e+00 : f32
    %514 = vector.broadcast %cst_111 : f32 to vector<8x32xf32>
    %515 = arith.addf %514, %513 : vector<8x32xf32>
    %516 = arith.divf %514, %515 : vector<8x32xf32>
    %517 = vector.extract_strided_slice %505 {offsets = [0, 32], sizes = [8, 32], strides = [1, 1]} : vector<8x128xf32> to vector<8x32xf32>
    %518 = arith.negf %517 : vector<8x32xf32>
    %519 = math.exp %518 : vector<8x32xf32>
    %cst_112 = arith.constant 1.000000e+00 : f32
    %520 = vector.broadcast %cst_112 : f32 to vector<8x32xf32>
    %521 = arith.addf %520, %519 : vector<8x32xf32>
    %522 = arith.divf %520, %521 : vector<8x32xf32>
    %523 = vector.extract_strided_slice %505 {offsets = [0, 64], sizes = [8, 32], strides = [1, 1]} : vector<8x128xf32> to vector<8x32xf32>
    %524 = math.tanh %523 : vector<8x32xf32>
    %525 = vector.extract_strided_slice %505 {offsets = [0, 96], sizes = [8, 32], strides = [1, 1]} : vector<8x128xf32> to vector<8x32xf32>
    %526 = arith.negf %525 : vector<8x32xf32>
    %527 = math.exp %526 : vector<8x32xf32>
    %cst_113 = arith.constant 1.000000e+00 : f32
    %528 = vector.broadcast %cst_113 : f32 to vector<8x32xf32>
    %529 = arith.addf %528, %527 : vector<8x32xf32>
    %530 = arith.divf %528, %529 : vector<8x32xf32>
    %531 = arith.mulf %522, %463 : vector<8x32xf32>
    %532 = arith.mulf %516, %524 : vector<8x32xf32>
    %533 = arith.addf %531, %532 : vector<8x32xf32>
    %534 = math.tanh %533 : vector<8x32xf32>
    %535 = arith.mulf %530, %534 : vector<8x32xf32>
    %536 = vector.extract_strided_slice %510 {offsets = [0, 0], sizes = [8, 32], strides = [1, 1]} : vector<8x128xf32> to vector<8x32xf32>
    %537 = arith.negf %536 : vector<8x32xf32>
    %538 = math.exp %537 : vector<8x32xf32>
    %cst_114 = arith.constant 1.000000e+00 : f32
    %539 = vector.broadcast %cst_114 : f32 to vector<8x32xf32>
    %540 = arith.addf %539, %538 : vector<8x32xf32>
    %541 = arith.divf %539, %540 : vector<8x32xf32>
    %542 = vector.extract_strided_slice %510 {offsets = [0, 32], sizes = [8, 32], strides = [1, 1]} : vector<8x128xf32> to vector<8x32xf32>
    %543 = arith.negf %542 : vector<8x32xf32>
    %544 = math.exp %543 : vector<8x32xf32>
    %cst_115 = arith.constant 1.000000e+00 : f32
    %545 = vector.broadcast %cst_115 : f32 to vector<8x32xf32>
    %546 = arith.addf %545, %544 : vector<8x32xf32>
    %547 = arith.divf %545, %546 : vector<8x32xf32>
    %548 = vector.extract_strided_slice %510 {offsets = [0, 64], sizes = [8, 32], strides = [1, 1]} : vector<8x128xf32> to vector<8x32xf32>
    %549 = math.tanh %548 : vector<8x32xf32>
    %550 = vector.extract_strided_slice %510 {offsets = [0, 96], sizes = [8, 32], strides = [1, 1]} : vector<8x128xf32> to vector<8x32xf32>
    %551 = arith.negf %550 : vector<8x32xf32>
    %552 = math.exp %551 : vector<8x32xf32>
    %cst_116 = arith.constant 1.000000e+00 : f32
    %553 = vector.broadcast %cst_116 : f32 to vector<8x32xf32>
    %554 = arith.addf %553, %552 : vector<8x32xf32>
    %555 = arith.divf %553, %554 : vector<8x32xf32>
    %556 = arith.mulf %547, %488 : vector<8x32xf32>
    %557 = arith.mulf %541, %549 : vector<8x32xf32>
    %558 = arith.addf %556, %557 : vector<8x32xf32>
    %559 = math.tanh %558 : vector<8x32xf32>
    %560 = arith.mulf %555, %559 : vector<8x32xf32>
    %561 = tpu.concatenate %535, %560 in 0 : vector<8x32xf32>, vector<8x32xf32> -> vector<16x32xf32>
    %562 = arith.truncf %561 : vector<16x32xf32> to vector<16x32xbf16>
    %563 = arith.index_cast %c7_i32 : i32 to index
    %c0_117 = arith.constant 0 : index
    %c0_118 = arith.constant 0 : index
    %564 = vector.load %arg4[%563, %c0_117, %c0_118] : memref<8x16x32xbf16, #tpu.memory_space<vmem>>, vector<1x16x32xbf16>
    %565 = vector.shape_cast %564 : vector<1x16x32xbf16> to vector<16x32xbf16>
    %566 = vector.shape_cast %562 : vector<16x32xbf16> to vector<1x16x32xbf16>
    tpu.vector_store %arg4[%563, %c0_117, %c0_118], %566 {strides = array<i32>} : memref<8x16x32xbf16, #tpu.memory_space<vmem>>, vector<1x16x32xbf16>,
    %c8_i32 = arith.constant 8 : i32
    %c0_119 = arith.constant 0 : index
    %c0_120 = arith.constant 0 : index
    %567 = vector.load %arg5[%c0_119, %c0_120] : memref<16x32xf32, #tpu.memory_space<vmem>>, vector<8x32xf32>
    tpu.vector_store %arg5[%c0_119, %c0_120], %535 {strides = array<i32>} : memref<16x32xf32, #tpu.memory_space<vmem>>, vector<8x32xf32>,
    %c0_121 = arith.constant 0 : index
    %c0_122 = arith.constant 0 : index
    %568 = vector.load %arg6[%c0_121, %c0_122] : memref<16x32xf32, #tpu.memory_space<vmem>>, vector<8x32xf32>
    tpu.vector_store %arg6[%c0_121, %c0_122], %533 {strides = array<i32>} : memref<16x32xf32, #tpu.memory_space<vmem>>, vector<8x32xf32>,
    %c8_123 = arith.constant 8 : index
    %c0_124 = arith.constant 0 : index
    %569 = vector.load %arg5[%c8_123, %c0_124] : memref<16x32xf32, #tpu.memory_space<vmem>>, vector<8x32xf32>
    tpu.vector_store %arg5[%c8_123, %c0_124], %560 {strides = array<i32>} : memref<16x32xf32, #tpu.memory_space<vmem>>, vector<8x32xf32>,
    %c8_125 = arith.constant 8 : index
    %c0_126 = arith.constant 0 : index
    %570 = vector.load %arg6[%c8_125, %c0_126] : memref<16x32xf32, #tpu.memory_space<vmem>>, vector<8x32xf32>
    tpu.vector_store %arg6[%c8_125, %c0_126], %558 {strides = array<i32>} : memref<16x32xf32, #tpu.memory_space<vmem>>, vector<8x32xf32>,
    return
  }
  func.func @transform_0(%arg0: i32, %arg1: i32) -> (i32, i32, i32) {
    %c0_i32 = arith.constant 0 : i32
    %c0_i32_0 = arith.constant 0 : i32
    return %arg1, %arg0, %c0_i32 : i32, i32, i32
  }
  func.func @transform_1(%arg0: i32, %arg1: i32) -> (i32, i32) {
    %c0_i32 = arith.constant 0 : i32
    %c0_i32_0 = arith.constant 0 : i32
    %c0_i32_1 = arith.constant 0 : i32
    return %c0_i32, %c0_i32_0 : i32, i32
  }
  func.func @transform_2(%arg0: i32, %arg1: i32) -> (i32, i32, i32) {
    %c0_i32 = arith.constant 0 : i32
    %c0_i32_0 = arith.constant 0 : i32
    return %arg1, %arg0, %c0_i32 : i32, i32, i32
  }
}

</mosaic_0001>

<llo_original>
// kernel: tpu_custom_call.1
$region0: #{tpu_custom_call.1}
  #allocation0 [shape = 'u32[]', space=smem, size = 0x4, offset = 0x4, fixed_abs, tag = 'smem constant byte address 0x4 - core index']
  #allocation1 [shape = 'u32[144,128]{1,0:T(1,128)}', space=vmem, size = 0x12000, scoped, tag = 'internal scratch']
  #allocation2 [shape = 'f32[16,32]{1,0:T(8,128)}', space=vmem, size = 0x2000, scoped, tag = 'scratch operand']
  #allocation3 [shape = 'f32[16,32]{1,0:T(8,128)}', space=vmem, size = 0x2000, scoped, tag = 'scratch operand']
  %s0 = inlined_call_operand.hbm [shape: bf16[8,16,128], index: 0, kind: input, shape index: {}]
  %s1 = inlined_call_operand.hbm [shape: bf16[32,128], index: 1, kind: input, shape index: {}]
  %s2 = inlined_call_operand.hbm [shape: bf16[8,16,32], index: 2, kind: output, shape index: {}]
  %s3 = sld [smem:[#allocation0]]
  $region30: #{tpu_custom_call.1} parent=0
    _
  %s5 = ssub.s32 1, %s3
  %s6 = scalar_select 0, %s5, %s3
  $region1: #{tpu_custom_call.1} parent=0
    #allocation4 [shape = 'u8[32768]{0}', space=vmem, size = 0x8000, scoped, tag = 'input window, operand 0, single buffered']
    #allocation5 [shape = 's32[1]{0}', space=sflag, size = 0x4, scoped, tag = 'scoped memory for tpu_custom_call.1']
    #allocation6 [shape = 's32[1]{0}', space=sflag, size = 0x4, scoped, tag = 'scoped memory for tpu_custom_call.1']
    #allocation7 [shape = 'u8[8192]{0}', space=vmem, size = 0x2000, scoped, tag = 'input window, operand 1, single buffered']
    #allocation8 [shape = 's32[1]{0}', space=sflag, size = 0x4, scoped, tag = 'scoped memory for tpu_custom_call.1']
    #allocation9 [shape = 'u8[32768]{0}', space=vmem, size = 0x8000, scoped, tag = 'output window, operand 0, single buffered']
    %7 = vsyncpa [#allocation5], 0
    %8 = vsyncpa [#allocation8], 0
    %9 = vsyncpa [#allocation6], 0
    // Predicated region
    $region2: #{tpu_custom_call.1} parent=1 // pred_check
      _
    $region3: #{tpu_custom_call.1} parent=1 // pred_check_branch
      %11 = sbr.rel (0) target = $region5
    $region4: #{tpu_custom_call.1} parent=1 // pred_region
      %s13 = ssub.s32 1024, 1024
      %14 = vsyncadd [#allocation5], %s13
      %s15 = sshll.u32 [#allocation4], 4
      %s16 = int_to_ptr.vmem [resolvable:$true] %s15
      %21 = dma.hbm_to_vmem [thread:$0]  %s0, 1024, %s16, [#allocation5], 64, 64, 4
    $region5: #{tpu_custom_call.1} parent=1 // pred_fallthru
      _
    // Predicated region
    $region6: #{tpu_custom_call.1} parent=1 // pred_check
      _
    $region7: #{tpu_custom_call.1} parent=1 // pred_check_branch
      %23 = sbr.rel (0) target = $region9
    $region8: #{tpu_custom_call.1} parent=1 // pred_region
      %s25 = ssub.s32 256, 256
      %26 = vsyncadd [#allocation8], %s25
      %s27 = sshll.u32 [#allocation7], 4
      %s28 = int_to_ptr.vmem [resolvable:$true] %s27
      %33 = dma.hbm_to_vmem [thread:$0]  %s1, 256, %s28, [#allocation8], 64, 64, 4
    $region9: #{tpu_custom_call.1} parent=1 // pred_fallthru
      _
    // Predicated region
    $region10: #{tpu_custom_call.1} parent=1 // pred_check
      _
    $region11: #{tpu_custom_call.1} parent=1 // pred_check_branch
      %35 = sbr.rel (0) target = $region13
    $region12: #{tpu_custom_call.1} parent=1 // pred_region
      %36 = dma.done [#allocation5], 1024
    $region13: #{tpu_custom_call.1} parent=1 // pred_fallthru
      _
    // Predicated region
    $region14: #{tpu_custom_call.1} parent=1 // pred_check
      _
    $region15: #{tpu_custom_call.1} parent=1 // pred_check_branch
      %38 = sbr.rel (0) target = $region17
    $region16: #{tpu_custom_call.1} parent=1 // pred_region
      %39 = dma.done [#allocation8], 256
    $region17: #{tpu_custom_call.1} parent=1 // pred_fallthru
      _
    %p41 = scmp.eq.s32.totalorder 0, 0
    // Predicated region
    $region18: #{tpu_custom_call.1} parent=1 // pred_check
      %p42 = pneg %p41
    $region19: #{tpu_custom_call.1} parent=1 // pred_check_branch
      %44 = sbr.rel (%p42) target = $region21
    $region20: #{tpu_custom_call.1} parent=1 // pred_region
      %vm45 = vcmask 261120
      %46 = vst.msk [vmem:[#allocation2] sm:$0xff] %vm45, 0.0
      %47 = vst.msk [vmem:[#allocation2 + $0x8] sm:$0xff] %vm45, 0.0
      %48 = vst.msk [vmem:[#allocation3] sm:$0xff] %vm45, 0.0
      %49 = vst.msk [vmem:[#allocation3 + $0x8] sm:$0xff] %vm45, 0.0
    $region21: #{tpu_custom_call.1} parent=1 // pred_fallthru
      _
    %v50 = vld [vmem:[#allocation2] sm:$0xff]
    %v51 = vld [vmem:[#allocation3] sm:$0xff]
    %v52 = vld [vmem:[#allocation2 + $0x8] sm:$0xff]
    %v53 = vld [vmem:[#allocation3 + $0x8] sm:$0xff]
    %v54 = vld [vmem:[#allocation7] sm:$0xf]
    %v55 = vld [vmem:[#allocation7 + $0x4] sm:$0xf]
    %v56 = vld [vmem:[#allocation7 + $0x8] sm:$0xf]
    %v57 = vld [vmem:[#allocation7 + $0xc] sm:$0xf]
    %v58 = vld [vmem:[#allocation4] sm:$0xf]
    %v59 = vld [vmem:[#allocation4 + $0x4] sm:$0xf]
    %v60 = vpack.c.bf16 %v50, %v50
    %v65 = vunpack.c.l.b16 %v54
    %v66 = vunpack.c.l.b16 %v55
    %v67 = vunpack.c.l.b16 %v56
    %v68 = vunpack.c.l.b16 %v57
    %v69 = vpack.c.b16 %v66, %v65
    %v70 = vpack.c.b16 %v68, %v67
    %vm73 = vcmask 261120
    %v75 = vsel %vm73, %v60, 0
    %77 = vmatprep.subr.bf16.mxu0 0
    %78 = vmatpush1.bf16.msra.mxu0 %v69
    %79 = vmatprep.subr.bf16.mxu0 0
    %80 = vmatpush1.bf16.msra.mxu0 %v70
    %81 = vmatprep.subr.bf16.mxu0 0
    %82 = vmatpush1.bf16.msra.mxu0 0
    %83 = vmatprep.subr.bf16.mxu0 0
    %84 = vmatpush1.bf16.msra.mxu0 0
    %85 = vmatprep.subr.bf16.mxu0 0
    %86 = vmatpush1.bf16.msra.mxu0 0
    %87 = vmatprep.subr.bf16.mxu0 0
    %88 = vmatpush1.bf16.msra.mxu0 0
    %89 = vmatprep.subr.bf16.mxu0 0
    %90 = vmatpush1.bf16.msra.mxu0 0
    %91 = vmatprep.subr.bf16.mxu0 0
    %92 = vmatpush1.bf16.msra.mxu0 0
    %93 = vmatprep.subr.bf16.mxu0 0
    %94 = vmatpush1.bf16.msra.mxu0 0
    %95 = vmatprep.subr.bf16.mxu0 0
    %96 = vmatpush1.bf16.msra.mxu0 0
    %97 = vmatprep.subr.bf16.mxu0 0
    %98 = vmatpush1.bf16.msra.mxu0 0
    %99 = vmatprep.subr.bf16.mxu0 0
    %100 = vmatpush1.bf16.msra.mxu0 0
    %101 = vmatprep.subr.bf16.mxu0 0
    %102 = vmatpush1.bf16.msra.mxu0 0
    %103 = vmatprep.subr.bf16.mxu0 0
    %104 = vmatpush1.bf16.msra.mxu0 0
    %105 = vmatprep.subr.bf16.mxu0 0
    %106 = vmatpush1.bf16.msra.mxu0 0
    %107 = vmatprep.subr.bf16.mxu0 0
    %108 = vmatpush1.bf16.msra.mxu0 0
    %109 = vmatprep.mubr.bf16.mxu0 0
    %110 = vmatmul.mubr.bf16.gmra.mrb[0].mxu0 %v75
    %v111 = vpop.f32.mrb[0].mxu0
    %v112 = vadd.f32 0.0, %v111
    %v113 = vpop.f32.mrb[0].mxu0
    %v114 = vpop.f32.mrb[0].mxu0
    %v115 = vpop.f32.mrb[0].mxu0
    %116 = vdwg.mxu0
    %v117 = vunpack.c.l.bf16 %v58
    %v118 = vadd.f32 %v117, %v112
    %v119 = vpack.c.bf16 %v52, %v52
    %v121 = vsel %vm73, %v119, 0
    %123 = vmatprep.subr.bf16.mxu0 0
    %124 = vmatpush1.bf16.msra.mxu0 %v69
    %125 = vmatprep.subr.bf16.mxu0 0
    %126 = vmatpush1.bf16.msra.mxu0 %v70
    %127 = vmatprep.subr.bf16.mxu0 0
    %128 = vmatpush1.bf16.msra.mxu0 0
    %129 = vmatprep.subr.bf16.mxu0 0
    %130 = vmatpush1.bf16.msra.mxu0 0
    %131 = vmatprep.subr.bf16.mxu0 0
    %132 = vmatpush1.bf16.msra.mxu0 0
    %133 = vmatprep.subr.bf16.mxu0 0
    %134 = vmatpush1.bf16.msra.mxu0 0
    %135 = vmatprep.subr.bf16.mxu0 0
    %136 = vmatpush1.bf16.msra.mxu0 0
    %137 = vmatprep.subr.bf16.mxu0 0
    %138 = vmatpush1.bf16.msra.mxu0 0
    %139 = vmatprep.subr.bf16.mxu0 0
    %140 = vmatpush1.bf16.msra.mxu0 0
    %141 = vmatprep.subr.bf16.mxu0 0
    %142 = vmatpush1.bf16.msra.mxu0 0
    %143 = vmatprep.subr.bf16.mxu0 0
    %144 = vmatpush1.bf16.msra.mxu0 0
    %145 = vmatprep.subr.bf16.mxu0 0
    %146 = vmatpush1.bf16.msra.mxu0 0
    %147 = vmatprep.subr.bf16.mxu0 0
    %148 = vmatpush1.bf16.msra.mxu0 0
    %149 = vmatprep.subr.bf16.mxu0 0
    %150 = vmatpush1.bf16.msra.mxu0 0
    %151 = vmatprep.subr.bf16.mxu0 0
    %152 = vmatpush1.bf16.msra.mxu0 0
    %153 = vmatprep.subr.bf16.mxu0 0
    %154 = vmatpush1.bf16.msra.mxu0 0
    %155 = vmatprep.mubr.bf16.mxu0 0
    %156 = vmatmul.mubr.bf16.gmra.mrb[0].mxu0 %v121
    %v157 = vpop.f32.mrb[0].mxu0
    %v158 = vadd.f32 0.0, %v157
    %v159 = vpop.f32.mrb[0].mxu0
    %v160 = vpop.f32.mrb[0].mxu0
    %v161 = vpop.f32.mrb[0].mxu0
    %162 = vdwg.mxu0
    %v163 = vunpack.c.l.bf16 %v59
    %v164 = vadd.f32 %v163, %v158
    %v165 = vxor.u32 %v118, 2147483648
    %v166 = vmul.f32 %v165, 1.442695
    %v167 = vpow.pop %v166
    %v168 = vadd.f32 %v167, 1.0
    %v169 = vrcp.pop %v168
    %v170 = vmul.f32 1.0, %v169
    %v171 = vtanh.pop %v118
    %173 = vrot.lane.b32.xlu0 %v51, 32
    %v174 = vpop.permute.xlu0 %173
    %v176 = vmul.f32 %v170, %v174
    %178 = vrot.lane.b32.xlu0 %v171, 64
    %v179 = vpop.permute.xlu0 %178
    %v181 = vmul.f32 %v170, %v179
    %183 = vrot.lane.b32.xlu0 %v181, 32
    %v184 = vpop.permute.xlu0 %183
    %v186 = vadd.f32 %v176, %v184
    %v187 = vtanh.pop %v186
    %189 = vrot.lane.b32.xlu0 %v187, 64
    %v190 = vpop.permute.xlu0 %189
    %v192 = vmul.f32 %v170, %v190
    %v193 = vxor.u32 %v164, 2147483648
    %v194 = vmul.f32 %v193, 1.442695
    %v195 = vpow.pop %v194
    %v196 = vadd.f32 %v195, 1.0
    %v197 = vrcp.pop %v196
    %v198 = vmul.f32 1.0, %v197
    %v199 = vtanh.pop %v164
    %201 = vrot.lane.b32.xlu0 %v53, 32
    %v202 = vpop.permute.xlu0 %201
    %v204 = vmul.f32 %v198, %v202
    %206 = vrot.lane.b32.xlu0 %v199, 64
    %v207 = vpop.permute.xlu0 %206
    %v209 = vmul.f32 %v198, %v207
    %211 = vrot.lane.b32.xlu0 %v209, 32
    %v212 = vpop.permute.xlu0 %211
    %v214 = vadd.f32 %v204, %v212
    %v215 = vtanh.pop %v214
    %217 = vrot.lane.b32.xlu0 %v215, 64
    %v218 = vpop.permute.xlu0 %217
    %v220 = vmul.f32 %v198, %v218
    %v221 = vpack.c.bf16 %v220, %v192
    %v223 = vunpack.c.l.b16 %v221
    %v224 = vunpack.c.h.b16 %v221
    %v225 = vpack.c.b16 %v223, %v223
    %v226 = vpack.c.b16 %v224, %v224
    %227 = vrot.lane.b32.xlu0 %v225, 32
    %v228 = vpop.permute.xlu0 %227
    %229 = vrot.lane.b32.xlu0 %v226, 32
    %v230 = vpop.permute.xlu0 %229
    %vm233 = vcmask 257024
    %234 = vst.msk [vmem:[#allocation9] sm:$0xf] %vm233, %v228
    %235 = vst.msk [vmem:[#allocation9 + $0x4] sm:$0xf] %vm233, %v230
    %v236 = vld [vmem:[#allocation7] sm:$0xf]
    %v237 = vld [vmem:[#allocation7 + $0x4] sm:$0xf]
    %v238 = vld [vmem:[#allocation7 + $0x8] sm:$0xf]
    %v239 = vld [vmem:[#allocation7 + $0xc] sm:$0xf]
    %s240 = scalar_lea.vmem [#allocation4], 8
    %v241 = vld [vmem:[%s240] sm:$0xf]
    %v242 = vld [vmem:[%s240 + $0x4] sm:$0xf]
    %v243 = vpack.c.bf16 %v192, %v192
    %245 = vrot.lane.b32.xlu0 %v243, 32
    %v246 = vpop.permute.xlu0 %245
    %v251 = vunpack.c.l.b16 %v236
    %v252 = vunpack.c.l.b16 %v237
    %v253 = vunpack.c.l.b16 %v238
    %v254 = vunpack.c.l.b16 %v239
    %v255 = vpack.c.b16 %v252, %v251
    %v256 = vpack.c.b16 %v254, %v253
    %v260 = vsel %vm73, %v246, 0
    %262 = vmatprep.subr.bf16.mxu0 0
    %263 = vmatpush1.bf16.msra.mxu0 %v255
    %264 = vmatprep.subr.bf16.mxu0 0
    %265 = vmatpush1.bf16.msra.mxu0 %v256
    %266 = vmatprep.subr.bf16.mxu0 0
    %267 = vmatpush1.bf16.msra.mxu0 0
    %268 = vmatprep.subr.bf16.mxu0 0
    %269 = vmatpush1.bf16.msra.mxu0 0
    %270 = vmatprep.subr.bf16.mxu0 0
    %271 = vmatpush1.bf16.msra.mxu0 0
    %272 = vmatprep.subr.bf16.mxu0 0
    %273 = vmatpush1.bf16.msra.mxu0 0
    %274 = vmatprep.subr.bf16.mxu0 0
    %275 = vmatpush1.bf16.msra.mxu0 0
    %276 = vmatprep.subr.bf16.mxu0 0
    %277 = vmatpush1.bf16.msra.mxu0 0
    %278 = vmatprep.subr.bf16.mxu0 0
    %279 = vmatpush1.bf16.msra.mxu0 0
    %280 = vmatprep.subr.bf16.mxu0 0
    %281 = vmatpush1.bf16.msra.mxu0 0
    %282 = vmatprep.subr.bf16.mxu0 0
    %283 = vmatpush1.bf16.msra.mxu0 0
    %284 = vmatprep.subr.bf16.mxu0 0
    %285 = vmatpush1.bf16.msra.mxu0 0
    %286 = vmatprep.subr.bf16.mxu0 0
    %287 = vmatpush1.bf16.msra.mxu0 0
    %288 = vmatprep.subr.bf16.mxu0 0
    %289 = vmatpush1.bf16.msra.mxu0 0
    %290 = vmatprep.subr.bf16.mxu0 0
    %291 = vmatpush1.bf16.msra.mxu0 0
    %292 = vmatprep.subr.bf16.mxu0 0
    %293 = vmatpush1.bf16.msra.mxu0 0
    %294 = vmatprep.mubr.bf16.mxu0 0
    %295 = vmatmul.mubr.bf16.gmra.mrb[0].mxu0 %v260
    %v296 = vpop.f32.mrb[0].mxu0
    %v297 = vadd.f32 0.0, %v296
    %v298 = vpop.f32.mrb[0].mxu0
    %v299 = vpop.f32.mrb[0].mxu0
    %v300 = vpop.f32.mrb[0].mxu0
    %301 = vdwg.mxu0
    %v302 = vunpack.c.l.bf16 %v241
    %v303 = vadd.f32 %v302, %v297
    %v304 = vpack.c.bf16 %v220, %v220
    %306 = vrot.lane.b32.xlu0 %v304, 32
    %v307 = vpop.permute.xlu0 %306
    %v309 = vsel %vm73, %v307, 0
    %311 = vmatprep.subr.bf16.mxu0 0
    %312 = vmatpush1.bf16.msra.mxu0 %v255
    %313 = vmatprep.subr.bf16.mxu0 0
    %314 = vmatpush1.bf16.msra.mxu0 %v256
    %315 = vmatprep.subr.bf16.mxu0 0
    %316 = vmatpush1.bf16.msra.mxu0 0
    %317 = vmatprep.subr.bf16.mxu0 0
    %318 = vmatpush1.bf16.msra.mxu0 0
    %319 = vmatprep.subr.bf16.mxu0 0
    %320 = vmatpush1.bf16.msra.mxu0 0
    %321 = vmatprep.subr.bf16.mxu0 0
    %322 = vmatpush1.bf16.msra.mxu0 0
    %323 = vmatprep.subr.bf16.mxu0 0
    %324 = vmatpush1.bf16.msra.mxu0 0
    %325 = vmatprep.subr.bf16.mxu0 0
    %326 = vmatpush1.bf16.msra.mxu0 0
    %327 = vmatprep.subr.bf16.mxu0 0
    %328 = vmatpush1.bf16.msra.mxu0 0
    %329 = vmatprep.subr.bf16.mxu0 0
    %330 = vmatpush1.bf16.msra.mxu0 0
    %331 = vmatprep.subr.bf16.mxu0 0
    %332 = vmatpush1.bf16.msra.mxu0 0
    %333 = vmatprep.subr.bf16.mxu0 0
    %334 = vmatpush1.bf16.msra.mxu0 0
    %335 = vmatprep.subr.bf16.mxu0 0
    %336 = vmatpush1.bf16.msra.mxu0 0
    %337 = vmatprep.subr.bf16.mxu0 0
    %338 = vmatpush1.bf16.msra.mxu0 0
    %339 = vmatprep.subr.bf16.mxu0 0
    %340 = vmatpush1.bf16.msra.mxu0 0
    %341 = vmatprep.subr.bf16.mxu0 0
    %342 = vmatpush1.bf16.msra.mxu0 0
    %343 = vmatprep.mubr.bf16.mxu0 0
    %344 = vmatmul.mubr.bf16.gmra.mrb[0].mxu0 %v309
    %v345 = vpop.f32.mrb[0].mxu0
    %v346 = vadd.f32 0.0, %v345
    %v347 = vpop.f32.mrb[0].mxu0
    %v348 = vpop.f32.mrb[0].mxu0
    %v349 = vpop.f32.mrb[0].mxu0
    %350 = vdwg.mxu0
    %v351 = vunpack.c.l.bf16 %v242
    %v352 = vadd.f32 %v351, %v346
    %v353 = vxor.u32 %v303, 2147483648
    %v354 = vmul.f32 %v353, 1.442695
    %v355 = vpow.pop %v354
    %v356 = vadd.f32 %v355, 1.0
    %v357 = vrcp.pop %v356
    %v358 = vmul.f32 1.0, %v357
    %v359 = vtanh.pop %v303
    %v360 = vmul.f32 %v358, %v186
    %362 = vrot.lane.b32.xlu0 %v359, 64
    %v363 = vpop.permute.xlu0 %362
    %v365 = vmul.f32 %v358, %v363
    %367 = vrot.lane.b32.xlu0 %v365, 32
    %v368 = vpop.permute.xlu0 %367
    %v370 = vadd.f32 %v360, %v368
    %v371 = vtanh.pop %v370
    %373 = vrot.lane.b32.xlu0 %v371, 64
    %v374 = vpop.permute.xlu0 %373
    %v376 = vmul.f32 %v358, %v374
    %v377 = vxor.u32 %v352, 2147483648
    %v378 = vmul.f32 %v377, 1.442695
    %v379 = vpow.pop %v378
    %v380 = vadd.f32 %v379, 1.0
    %v381 = vrcp.pop %v380
    %v382 = vmul.f32 1.0, %v381
    %v383 = vtanh.pop %v352
    %v384 = vmul.f32 %v382, %v214
    %386 = vrot.lane.b32.xlu0 %v383, 64
    %v387 = vpop.permute.xlu0 %386
    %v389 = vmul.f32 %v382, %v387
    %391 = vrot.lane.b32.xlu0 %v389, 32
    %v392 = vpop.permute.xlu0 %391
    %v394 = vadd.f32 %v384, %v392
    %v395 = vtanh.pop %v394
    %397 = vrot.lane.b32.xlu0 %v395, 64
    %v398 = vpop.permute.xlu0 %397
    %v400 = vmul.f32 %v382, %v398
    %v401 = vpack.c.bf16 %v400, %v376
    %v403 = vunpack.c.l.b16 %v401
    %v404 = vunpack.c.h.b16 %v401
    %v405 = vpack.c.b16 %v403, %v403
    %v406 = vpack.c.b16 %v404, %v404
    %407 = vrot.lane.b32.xlu0 %v405, 32
    %v408 = vpop.permute.xlu0 %407
    %409 = vrot.lane.b32.xlu0 %v406, 32
    %v410 = vpop.permute.xlu0 %409
    %s413 = scalar_lea.vmem [#allocation9], 8
    %414 = vst.msk [vmem:[%s413] sm:$0xf] %vm233, %v408
    %415 = vst.msk [vmem:[%s413 + $0x4] sm:$0xf] %vm233, %v410
    %v416 = vld [vmem:[#allocation7] sm:$0xf]
    %v417 = vld [vmem:[#allocation7 + $0x4] sm:$0xf]
    %v418 = vld [vmem:[#allocation7 + $0x8] sm:$0xf]
    %v419 = vld [vmem:[#allocation7 + $0xc] sm:$0xf]
    %s420 = scalar_lea.vmem [#allocation4], 16
    %v421 = vld [vmem:[%s420] sm:$0xf]
    %v422 = vld [vmem:[%s420 + $0x4] sm:$0xf]
    %v423 = vpack.c.bf16 %v376, %v376
    %425 = vrot.lane.b32.xlu0 %v423, 32
    %v426 = vpop.permute.xlu0 %425
    %v431 = vunpack.c.l.b16 %v416
    %v432 = vunpack.c.l.b16 %v417
    %v433 = vunpack.c.l.b16 %v418
    %v434 = vunpack.c.l.b16 %v419
    %v435 = vpack.c.b16 %v432, %v431
    %v436 = vpack.c.b16 %v434, %v433
    %v440 = vsel %vm73, %v426, 0
    %442 = vmatprep.subr.bf16.mxu0 0
    %443 = vmatpush1.bf16.msra.mxu0 %v435
    %444 = vmatprep.subr.bf16.mxu0 0
    %445 = vmatpush1.bf16.msra.mxu0 %v436
    %446 = vmatprep.subr.bf16.mxu0 0
    %447 = vmatpush1.bf16.msra.mxu0 0
    %448 = vmatprep.subr.bf16.mxu0 0
    %449 = vmatpush1.bf16.msra.mxu0 0
    %450 = vmatprep.subr.bf16.mxu0 0
    %451 = vmatpush1.bf16.msra.mxu0 0
    %452 = vmatprep.subr.bf16.mxu0 0
    %453 = vmatpush1.bf16.msra.mxu0 0
    %454 = vmatprep.subr.bf16.mxu0 0
    %455 = vmatpush1.bf16.msra.mxu0 0
    %456 = vmatprep.subr.bf16.mxu0 0
    %457 = vmatpush1.bf16.msra.mxu0 0
    %458 = vmatprep.subr.bf16.mxu0 0
    %459 = vmatpush1.bf16.msra.mxu0 0
    %460 = vmatprep.subr.bf16.mxu0 0
    %461 = vmatpush1.bf16.msra.mxu0 0
    %462 = vmatprep.subr.bf16.mxu0 0
    %463 = vmatpush1.bf16.msra.mxu0 0
    %464 = vmatprep.subr.bf16.mxu0 0
    %465 = vmatpush1.bf16.msra.mxu0 0
    %466 = vmatprep.subr.bf16.mxu0 0
    %467 = vmatpush1.bf16.msra.mxu0 0
    %468 = vmatprep.subr.bf16.mxu0 0
    %469 = vmatpush1.bf16.msra.mxu0 0
    %470 = vmatprep.subr.bf16.mxu0 0
    %471 = vmatpush1.bf16.msra.mxu0 0
    %472 = vmatprep.subr.bf16.mxu0 0
    %473 = vmatpush1.bf16.msra.mxu0 0
    %474 = vmatprep.mubr.bf16.mxu0 0
    %475 = vmatmul.mubr.bf16.gmra.mrb[0].mxu0 %v440
    %v476 = vpop.f32.mrb[0].mxu0
    %v477 = vadd.f32 0.0, %v476
    %v478 = vpop.f32.mrb[0].mxu0
    %v479 = vpop.f32.mrb[0].mxu0
    %v480 = vpop.f32.mrb[0].mxu0
    %481 = vdwg.mxu0
    %v482 = vunpack.c.l.bf16 %v421
    %v483 = vadd.f32 %v482, %v477
    %v484 = vpack.c.bf16 %v400, %v400
    %486 = vrot.lane.b32.xlu0 %v484, 32
    %v487 = vpop.permute.xlu0 %486
    %v489 = vsel %vm73, %v487, 0
    %491 = vmatprep.subr.bf16.mxu0 0
    %492 = vmatpush1.bf16.msra.mxu0 %v435
    %493 = vmatprep.subr.bf16.mxu0 0
    %494 = vmatpush1.bf16.msra.mxu0 %v436
    %495 = vmatprep.subr.bf16.mxu0 0
    %496 = vmatpush1.bf16.msra.mxu0 0
    %497 = vmatprep.subr.bf16.mxu0 0
    %498 = vmatpush1.bf16.msra.mxu0 0
    %499 = vmatprep.subr.bf16.mxu0 0
    %500 = vmatpush1.bf16.msra.mxu0 0
    %501 = vmatprep.subr.bf16.mxu0 0
    %502 = vmatpush1.bf16.msra.mxu0 0
    %503 = vmatprep.subr.bf16.mxu0 0
    %504 = vmatpush1.bf16.msra.mxu0 0
    %505 = vmatprep.subr.bf16.mxu0 0
    %506 = vmatpush1.bf16.msra.mxu0 0
    %507 = vmatprep.subr.bf16.mxu0 0
    %508 = vmatpush1.bf16.msra.mxu0 0
    %509 = vmatprep.subr.bf16.mxu0 0
    %510 = vmatpush1.bf16.msra.mxu0 0
    %511 = vmatprep.subr.bf16.mxu0 0
    %512 = vmatpush1.bf16.msra.mxu0 0
    %513 = vmatprep.subr.bf16.mxu0 0
    %514 = vmatpush1.bf16.msra.mxu0 0
    %515 = vmatprep.subr.bf16.mxu0 0
    %516 = vmatpush1.bf16.msra.mxu0 0
    %517 = vmatprep.subr.bf16.mxu0 0
    %518 = vmatpush1.bf16.msra.mxu0 0
    %519 = vmatprep.subr.bf16.mxu0 0
    %520 = vmatpush1.bf16.msra.mxu0 0
    %521 = vmatprep.subr.bf16.mxu0 0
    %522 = vmatpush1.bf16.msra.mxu0 0
    %523 = vmatprep.mubr.bf16.mxu0 0
    %524 = vmatmul.mubr.bf16.gmra.mrb[0].mxu0 %v489
    %v525 = vpop.f32.mrb[0].mxu0
    %v526 = vadd.f32 0.0, %v525
    %v527 = vpop.f32.mrb[0].mxu0
    %v528 = vpop.f32.mrb[0].mxu0
    %v529 = vpop.f32.mrb[0].mxu0
    %530 = vdwg.mxu0
    %v531 = vunpack.c.l.bf16 %v422
    %v532 = vadd.f32 %v531, %v526
    %v533 = vxor.u32 %v483, 2147483648
    %v534 = vmul.f32 %v533, 1.442695
    %v535 = vpow.pop %v534
    %v536 = vadd.f32 %v535, 1.0
    %v537 = vrcp.pop %v536
    %v538 = vmul.f32 1.0, %v537
    %v539 = vtanh.pop %v483
    %v540 = vmul.f32 %v538, %v370
    %542 = vrot.lane.b32.xlu0 %v539, 64
    %v543 = vpop.permute.xlu0 %542
    %v545 = vmul.f32 %v538, %v543
    %547 = vrot.lane.b32.xlu0 %v545, 32
    %v548 = vpop.permute.xlu0 %547
    %v550 = vadd.f32 %v540, %v548
    %v551 = vtanh.pop %v550
    %553 = vrot.lane.b32.xlu0 %v551, 64
    %v554 = vpop.permute.xlu0 %553
    %v556 = vmul.f32 %v538, %v554
    %v557 = vxor.u32 %v532, 2147483648
    %v558 = vmul.f32 %v557, 1.442695
    %v559 = vpow.pop %v558
    %v560 = vadd.f32 %v559, 1.0
    %v561 = vrcp.pop %v560
    %v562 = vmul.f32 1.0, %v561
    %v563 = vtanh.pop %v532
    %v564 = vmul.f32 %v562, %v394
    %566 = vrot.lane.b32.xlu0 %v563, 64
    %v567 = vpop.permute.xlu0 %566
    %v569 = vmul.f32 %v562, %v567
    %571 = vrot.lane.b32.xlu0 %v569, 32
    %v572 = vpop.permute.xlu0 %571
    %v574 = vadd.f32 %v564, %v572
    %v575 = vtanh.pop %v574
    %577 = vrot.lane.b32.xlu0 %v575, 64
    %v578 = vpop.permute.xlu0 %577
    %v580 = vmul.f32 %v562, %v578
    %v581 = vpack.c.bf16 %v580, %v556
    %v583 = vunpack.c.l.b16 %v581
    %v584 = vunpack.c.h.b16 %v581
    %v585 = vpack.c.b16 %v583, %v583
    %v586 = vpack.c.b16 %v584, %v584
    %587 = vrot.lane.b32.xlu0 %v585, 32
    %v588 = vpop.permute.xlu0 %587
    %589 = vrot.lane.b32.xlu0 %v586, 32
    %v590 = vpop.permute.xlu0 %589
    %s593 = scalar_lea.vmem [#allocation9], 16
    %594 = vst.msk [vmem:[%s593] sm:$0xf] %vm233, %v588
    %595 = vst.msk [vmem:[%s593 + $0x4] sm:$0xf] %vm233, %v590
    %v596 = vld [vmem:[#allocation7] sm:$0xf]
    %v597 = vld [vmem:[#allocation7 + $0x4] sm:$0xf]
    %v598 = vld [vmem:[#allocation7 + $0x8] sm:$0xf]
    %v599 = vld [vmem:[#allocation7 + $0xc] sm:$0xf]
    %s600 = scalar_lea.vmem [#allocation4], 24
    %v601 = vld [vmem:[%s600] sm:$0xf]
    %v602 = vld [vmem:[%s600 + $0x4] sm:$0xf]
    %v603 = vpack.c.bf16 %v556, %v556
    %605 = vrot.lane.b32.xlu0 %v603, 32
    %v606 = vpop.permute.xlu0 %605
    %v611 = vunpack.c.l.b16 %v596
    %v612 = vunpack.c.l.b16 %v597
    %v613 = vunpack.c.l.b16 %v598
    %v614 = vunpack.c.l.b16 %v599
    %v615 = vpack.c.b16 %v612, %v611
    %v616 = vpack.c.b16 %v614, %v613
    %v620 = vsel %vm73, %v606, 0
    %622 = vmatprep.subr.bf16.mxu0 0
    %623 = vmatpush1.bf16.msra.mxu0 %v615
    %624 = vmatprep.subr.bf16.mxu0 0
    %625 = vmatpush1.bf16.msra.mxu0 %v616
    %626 = vmatprep.subr.bf16.mxu0 0
    %627 = vmatpush1.bf16.msra.mxu0 0
    %628 = vmatprep.subr.bf16.mxu0 0
    %629 = vmatpush1.bf16.msra.mxu0 0
    %630 = vmatprep.subr.bf16.mxu0 0
    %631 = vmatpush1.bf16.msra.mxu0 0
    %632 = vmatprep.subr.bf16.mxu0 0
    %633 = vmatpush1.bf16.msra.mxu0 0
    %634 = vmatprep.subr.bf16.mxu0 0
    %635 = vmatpush1.bf16.msra.mxu0 0
    %636 = vmatprep.subr.bf16.mxu0 0
    %637 = vmatpush1.bf16.msra.mxu0 0
    %638 = vmatprep.subr.bf16.mxu0 0
    %639 = vmatpush1.bf16.msra.mxu0 0
    %640 = vmatprep.subr.bf16.mxu0 0
    %641 = vmatpush1.bf16.msra.mxu0 0
    %642 = vmatprep.subr.bf16.mxu0 0
    %643 = vmatpush1.bf16.msra.mxu0 0
    %644 = vmatprep.subr.bf16.mxu0 0
    %645 = vmatpush1.bf16.msra.mxu0 0
    %646 = vmatprep.subr.bf16.mxu0 0
    %647 = vmatpush1.bf16.msra.mxu0 0
    %648 = vmatprep.subr.bf16.mxu0 0
    %649 = vmatpush1.bf16.msra.mxu0 0
    %650 = vmatprep.subr.bf16.mxu0 0
    %651 = vmatpush1.bf16.msra.mxu0 0
    %652 = vmatprep.subr.bf16.mxu0 0
    %653 = vmatpush1.bf16.msra.mxu0 0
    %654 = vmatprep.mubr.bf16.mxu0 0
    %655 = vmatmul.mubr.bf16.gmra.mrb[0].mxu0 %v620
    %v656 = vpop.f32.mrb[0].mxu0
    %v657 = vadd.f32 0.0, %v656
    %v658 = vpop.f32.mrb[0].mxu0
    %v659 = vpop.f32.mrb[0].mxu0
    %v660 = vpop.f32.mrb[0].mxu0
    %661 = vdwg.mxu0
    %v662 = vunpack.c.l.bf16 %v601
    %v663 = vadd.f32 %v662, %v657
    %v664 = vpack.c.bf16 %v580, %v580
    %666 = vrot.lane.b32.xlu0 %v664, 32
    %v667 = vpop.permute.xlu0 %666
    %v669 = vsel %vm73, %v667, 0
    %671 = vmatprep.subr.bf16.mxu0 0
    %672 = vmatpush1.bf16.msra.mxu0 %v615
    %673 = vmatprep.subr.bf16.mxu0 0
    %674 = vmatpush1.bf16.msra.mxu0 %v616
    %675 = vmatprep.subr.bf16.mxu0 0
    %676 = vmatpush1.bf16.msra.mxu0 0
    %677 = vmatprep.subr.bf16.mxu0 0
    %678 = vmatpush1.bf16.msra.mxu0 0
    %679 = vmatprep.subr.bf16.mxu0 0
    %680 = vmatpush1.bf16.msra.mxu0 0
    %681 = vmatprep.subr.bf16.mxu0 0
    %682 = vmatpush1.bf16.msra.mxu0 0
    %683 = vmatprep.subr.bf16.mxu0 0
    %684 = vmatpush1.bf16.msra.mxu0 0
    %685 = vmatprep.subr.bf16.mxu0 0
    %686 = vmatpush1.bf16.msra.mxu0 0
    %687 = vmatprep.subr.bf16.mxu0 0
    %688 = vmatpush1.bf16.msra.mxu0 0
    %689 = vmatprep.subr.bf16.mxu0 0
    %690 = vmatpush1.bf16.msra.mxu0 0
    %691 = vmatprep.subr.bf16.mxu0 0
    %692 = vmatpush1.bf16.msra.mxu0 0
    %693 = vmatprep.subr.bf16.mxu0 0
    %694 = vmatpush1.bf16.msra.mxu0 0
    %695 = vmatprep.subr.bf16.mxu0 0
    %696 = vmatpush1.bf16.msra.mxu0 0
    %697 = vmatprep.subr.bf16.mxu0 0
    %698 = vmatpush1.bf16.msra.mxu0 0
    %699 = vmatprep.subr.bf16.mxu0 0
    %700 = vmatpush1.bf16.msra.mxu0 0
    %701 = vmatprep.subr.bf16.mxu0 0
    %702 = vmatpush1.bf16.msra.mxu0 0
    %703 = vmatprep.mubr.bf16.mxu0 0
    %704 = vmatmul.mubr.bf16.gmra.mrb[0].mxu0 %v669
    %v705 = vpop.f32.mrb[0].mxu0
    %v706 = vadd.f32 0.0, %v705
    %v707 = vpop.f32.mrb[0].mxu0
    %v708 = vpop.f32.mrb[0].mxu0
    %v709 = vpop.f32.mrb[0].mxu0
    %710 = vdwg.mxu0
    %v711 = vunpack.c.l.bf16 %v602
    %v712 = vadd.f32 %v711, %v706
    %v713 = vxor.u32 %v663, 2147483648
    %v714 = vmul.f32 %v713, 1.442695
    %v715 = vpow.pop %v714
    %v716 = vadd.f32 %v715, 1.0
    %v717 = vrcp.pop %v716
    %v718 = vmul.f32 1.0, %v717
    %v719 = vtanh.pop %v663
    %v720 = vmul.f32 %v718, %v550
    %722 = vrot.lane.b32.xlu0 %v719, 64
    %v723 = vpop.permute.xlu0 %722
    %v725 = vmul.f32 %v718, %v723
    %727 = vrot.lane.b32.xlu0 %v725, 32
    %v728 = vpop.permute.xlu0 %727
    %v730 = vadd.f32 %v720, %v728
    %v731 = vtanh.pop %v730
    %733 = vrot.lane.b32.xlu0 %v731, 64
    %v734 = vpop.permute.xlu0 %733
    %v736 = vmul.f32 %v718, %v734
    %v737 = vxor.u32 %v712, 2147483648
    %v738 = vmul.f32 %v737, 1.442695
    %v739 = vpow.pop %v738
    %v740 = vadd.f32 %v739, 1.0
    %v741 = vrcp.pop %v740
    %v742 = vmul.f32 1.0, %v741
    %v743 = vtanh.pop %v712
    %v744 = vmul.f32 %v742, %v574
    %746 = vrot.lane.b32.xlu0 %v743, 64
    %v747 = vpop.permute.xlu0 %746
    %v749 = vmul.f32 %v742, %v747
    %751 = vrot.lane.b32.xlu0 %v749, 32
    %v752 = vpop.permute.xlu0 %751
    %v754 = vadd.f32 %v744, %v752
    %v755 = vtanh.pop %v754
    %757 = vrot.lane.b32.xlu0 %v755, 64
    %v758 = vpop.permute.xlu0 %757
    %v760 = vmul.f32 %v742, %v758
    %v761 = vpack.c.bf16 %v760, %v736
    %v763 = vunpack.c.l.b16 %v761
    %v764 = vunpack.c.h.b16 %v761
    %v765 = vpack.c.b16 %v763, %v763
    %v766 = vpack.c.b16 %v764, %v764
    %767 = vrot.lane.b32.xlu0 %v765, 32
    %v768 = vpop.permute.xlu0 %767
    %769 = vrot.lane.b32.xlu0 %v766, 32
    %v770 = vpop.permute.xlu0 %769
    %s773 = scalar_lea.vmem [#allocation9], 24
    %774 = vst.msk [vmem:[%s773] sm:$0xf] %vm233, %v768
    %775 = vst.msk [vmem:[%s773 + $0x4] sm:$0xf] %vm233, %v770
    %v776 = vld [vmem:[#allocation7] sm:$0xf]
    %v777 = vld [vmem:[#allocation7 + $0x4] sm:$0xf]
    %v778 = vld [vmem:[#allocation7 + $0x8] sm:$0xf]
    %v779 = vld [vmem:[#allocation7 + $0xc] sm:$0xf]
    %s780 = scalar_lea.vmem [#allocation4], 32
    %v781 = vld [vmem:[%s780] sm:$0xf]
    %v782 = vld [vmem:[%s780 + $0x4] sm:$0xf]
    %v783 = vpack.c.bf16 %v736, %v736
    %785 = vrot.lane.b32.xlu0 %v783, 32
    %v786 = vpop.permute.xlu0 %785
    %v791 = vunpack.c.l.b16 %v776
    %v792 = vunpack.c.l.b16 %v777
    %v793 = vunpack.c.l.b16 %v778
    %v794 = vunpack.c.l.b16 %v779
    %v795 = vpack.c.b16 %v792, %v791
    %v796 = vpack.c.b16 %v794, %v793
    %v800 = vsel %vm73, %v786, 0
    %802 = vmatprep.subr.bf16.mxu0 0
    %803 = vmatpush1.bf16.msra.mxu0 %v795
    %804 = vmatprep.subr.bf16.mxu0 0
    %805 = vmatpush1.bf16.msra.mxu0 %v796
    %806 = vmatprep.subr.bf16.mxu0 0
    %807 = vmatpush1.bf16.msra.mxu0 0
    %808 = vmatprep.subr.bf16.mxu0 0
    %809 = vmatpush1.bf16.msra.mxu0 0
    %810 = vmatprep.subr.bf16.mxu0 0
    %811 = vmatpush1.bf16.msra.mxu0 0
    %812 = vmatprep.subr.bf16.mxu0 0
    %813 = vmatpush1.bf16.msra.mxu0 0
    %814 = vmatprep.subr.bf16.mxu0 0
    %815 = vmatpush1.bf16.msra.mxu0 0
    %816 = vmatprep.subr.bf16.mxu0 0
    %817 = vmatpush1.bf16.msra.mxu0 0
    %818 = vmatprep.subr.bf16.mxu0 0
    %819 = vmatpush1.bf16.msra.mxu0 0
    %820 = vmatprep.subr.bf16.mxu0 0
    %821 = vmatpush1.bf16.msra.mxu0 0
    %822 = vmatprep.subr.bf16.mxu0 0
    %823 = vmatpush1.bf16.msra.mxu0 0
    %824 = vmatprep.subr.bf16.mxu0 0
    %825 = vmatpush1.bf16.msra.mxu0 0
    %826 = vmatprep.subr.bf16.mxu0 0
    %827 = vmatpush1.bf16.msra.mxu0 0
    %828 = vmatprep.subr.bf16.mxu0 0
    %829 = vmatpush1.bf16.msra.mxu0 0
    %830 = vmatprep.subr.bf16.mxu0 0
    %831 = vmatpush1.bf16.msra.mxu0 0
    %832 = vmatprep.subr.bf16.mxu0 0
    %833 = vmatpush1.bf16.msra.mxu0 0
    %834 = vmatprep.mubr.bf16.mxu0 0
    %835 = vmatmul.mubr.bf16.gmra.mrb[0].mxu0 %v800
    %v836 = vpop.f32.mrb[0].mxu0
    %v837 = vadd.f32 0.0, %v836
    %v838 = vpop.f32.mrb[0].mxu0
    %v839 = vpop.f32.mrb[0].mxu0
    %v840 = vpop.f32.mrb[0].mxu0
    %841 = vdwg.mxu0
    %v842 = vunpack.c.l.bf16 %v781
    %v843 = vadd.f32 %v842, %v837
    %v844 = vpack.c.bf16 %v760, %v760
    %846 = vrot.lane.b32.xlu0 %v844, 32
    %v847 = vpop.permute.xlu0 %846
    %v849 = vsel %vm73, %v847, 0
    %851 = vmatprep.subr.bf16.mxu0 0
    %852 = vmatpush1.bf16.msra.mxu0 %v795
    %853 = vmatprep.subr.bf16.mxu0 0
    %854 = vmatpush1.bf16.msra.mxu0 %v796
    %855 = vmatprep.subr.bf16.mxu0 0
    %856 = vmatpush1.bf16.msra.mxu0 0
    %857 = vmatprep.subr.bf16.mxu0 0
    %858 = vmatpush1.bf16.msra.mxu0 0
    %859 = vmatprep.subr.bf16.mxu0 0
    %860 = vmatpush1.bf16.msra.mxu0 0
    %861 = vmatprep.subr.bf16.mxu0 0
    %862 = vmatpush1.bf16.msra.mxu0 0
    %863 = vmatprep.subr.bf16.mxu0 0
    %864 = vmatpush1.bf16.msra.mxu0 0
    %865 = vmatprep.subr.bf16.mxu0 0
    %866 = vmatpush1.bf16.msra.mxu0 0
    %867 = vmatprep.subr.bf16.mxu0 0
    %868 = vmatpush1.bf16.msra.mxu0 0
    %869 = vmatprep.subr.bf16.mxu0 0
    %870 = vmatpush1.bf16.msra.mxu0 0
    %871 = vmatprep.subr.bf16.mxu0 0
    %872 = vmatpush1.bf16.msra.mxu0 0
    %873 = vmatprep.subr.bf16.mxu0 0
    %874 = vmatpush1.bf16.msra.mxu0 0
    %875 = vmatprep.subr.bf16.mxu0 0
    %876 = vmatpush1.bf16.msra.mxu0 0
    %877 = vmatprep.subr.bf16.mxu0 0
    %878 = vmatpush1.bf16.msra.mxu0 0
    %879 = vmatprep.subr.bf16.mxu0 0
    %880 = vmatpush1.bf16.msra.mxu0 0
    %881 = vmatprep.subr.bf16.mxu0 0
    %882 = vmatpush1.bf16.msra.mxu0 0
    %883 = vmatprep.mubr.bf16.mxu0 0
    %884 = vmatmul.mubr.bf16.gmra.mrb[0].mxu0 %v849
    %v885 = vpop.f32.mrb[0].mxu0
    %v886 = vadd.f32 0.0, %v885
    %v887 = vpop.f32.mrb[0].mxu0
    %v888 = vpop.f32.mrb[0].mxu0
    %v889 = vpop.f32.mrb[0].mxu0
    %890 = vdwg.mxu0
    %v891 = vunpack.c.l.bf16 %v782
    %v892 = vadd.f32 %v891, %v886
    %v893 = vxor.u32 %v843, 2147483648
    %v894 = vmul.f32 %v893, 1.442695
    %v895 = vpow.pop %v894
    %v896 = vadd.f32 %v895, 1.0
    %v897 = vrcp.pop %v896
    %v898 = vmul.f32 1.0, %v897
    %v899 = vtanh.pop %v843
    %v900 = vmul.f32 %v898, %v730
    %902 = vrot.lane.b32.xlu0 %v899, 64
    %v903 = vpop.permute.xlu0 %902
    %v905 = vmul.f32 %v898, %v903
    %907 = vrot.lane.b32.xlu0 %v905, 32
    %v908 = vpop.permute.xlu0 %907
    %v910 = vadd.f32 %v900, %v908
    %v911 = vtanh.pop %v910
    %913 = vrot.lane.b32.xlu0 %v911, 64
    %v914 = vpop.permute.xlu0 %913
    %v916 = vmul.f32 %v898, %v914
    %v917 = vxor.u32 %v892, 2147483648
    %v918 = vmul.f32 %v917, 1.442695
    %v919 = vpow.pop %v918
    %v920 = vadd.f32 %v919, 1.0
    %v921 = vrcp.pop %v920
    %v922 = vmul.f32 1.0, %v921
    %v923 = vtanh.pop %v892
    %v924 = vmul.f32 %v922, %v754
    %926 = vrot.lane.b32.xlu0 %v923, 64
    %v927 = vpop.permute.xlu0 %926
    %v929 = vmul.f32 %v922, %v927
    %931 = vrot.lane.b32.xlu0 %v929, 32
    %v932 = vpop.permute.xlu0 %931
    %v934 = vadd.f32 %v924, %v932
    %v935 = vtanh.pop %v934
    %937 = vrot.lane.b32.xlu0 %v935, 64
    %v938 = vpop.permute.xlu0 %937
    %v940 = vmul.f32 %v922, %v938
    %v941 = vpack.c.bf16 %v940, %v916
    %v943 = vunpack.c.l.b16 %v941
    %v944 = vunpack.c.h.b16 %v941
    %v945 = vpack.c.b16 %v943, %v943
    %v946 = vpack.c.b16 %v944, %v944
    %947 = vrot.lane.b32.xlu0 %v945, 32
    %v948 = vpop.permute.xlu0 %947
    %949 = vrot.lane.b32.xlu0 %v946, 32
    %v950 = vpop.permute.xlu0 %949
    %s953 = scalar_lea.vmem [#allocation9], 32
    %954 = vst.msk [vmem:[%s953] sm:$0xf] %vm233, %v948
    %955 = vst.msk [vmem:[%s953 + $0x4] sm:$0xf] %vm233, %v950
    %v956 = vld [vmem:[#allocation7] sm:$0xf]
    %v957 = vld [vmem:[#allocation7 + $0x4] sm:$0xf]
    %v958 = vld [vmem:[#allocation7 + $0x8] sm:$0xf]
    %v959 = vld [vmem:[#allocation7 + $0xc] sm:$0xf]
    %s960 = scalar_lea.vmem [#allocation4], 40
    %v961 = vld [vmem:[%s960] sm:$0xf]
    %v962 = vld [vmem:[%s960 + $0x4] sm:$0xf]
    %v963 = vpack.c.bf16 %v916, %v916
    %965 = vrot.lane.b32.xlu0 %v963, 32
    %v966 = vpop.permute.xlu0 %965
    %v971 = vunpack.c.l.b16 %v956
    %v972 = vunpack.c.l.b16 %v957
    %v973 = vunpack.c.l.b16 %v958
    %v974 = vunpack.c.l.b16 %v959
    %v975 = vpack.c.b16 %v972, %v971
    %v976 = vpack.c.b16 %v974, %v973
    %v980 = vsel %vm73, %v966, 0
    %982 = vmatprep.subr.bf16.mxu0 0
    %983 = vmatpush1.bf16.msra.mxu0 %v975
    %984 = vmatprep.subr.bf16.mxu0 0
    %985 = vmatpush1.bf16.msra.mxu0 %v976
    %986 = vmatprep.subr.bf16.mxu0 0
    %987 = vmatpush1.bf16.msra.mxu0 0
    %988 = vmatprep.subr.bf16.mxu0 0
    %989 = vmatpush1.bf16.msra.mxu0 0
    %990 = vmatprep.subr.bf16.mxu0 0
    %991 = vmatpush1.bf16.msra.mxu0 0
    %992 = vmatprep.subr.bf16.mxu0 0
    %993 = vmatpush1.bf16.msra.mxu0 0
    %994 = vmatprep.subr.bf16.mxu0 0
    %995 = vmatpush1.bf16.msra.mxu0 0
    %996 = vmatprep.subr.bf16.mxu0 0
    %997 = vmatpush1.bf16.msra.mxu0 0
    %998 = vmatprep.subr.bf16.mxu0 0
    %999 = vmatpush1.bf16.msra.mxu0 0
    %1000 = vmatprep.subr.bf16.mxu0 0
    %1001 = vmatpush1.bf16.msra.mxu0 0
    %1002 = vmatprep.subr.bf16.mxu0 0
    %1003 = vmatpush1.bf16.msra.mxu0 0
    %1004 = vmatprep.subr.bf16.mxu0 0
    %1005 = vmatpush1.bf16.msra.mxu0 0
    %1006 = vmatprep.subr.bf16.mxu0 0
    %1007 = vmatpush1.bf16.msra.mxu0 0
    %1008 = vmatprep.subr.bf16.mxu0 0
    %1009 = vmatpush1.bf16.msra.mxu0 0
    %1010 = vmatprep.subr.bf16.mxu0 0
    %1011 = vmatpush1.bf16.msra.mxu0 0
    %1012 = vmatprep.subr.bf16.mxu0 0
    %1013 = vmatpush1.bf16.msra.mxu0 0
    %1014 = vmatprep.mubr.bf16.mxu0 0
    %1015 = vmatmul.mubr.bf16.gmra.mrb[0].mxu0 %v980
    %v1016 = vpop.f32.mrb[0].mxu0
    %v1017 = vadd.f32 0.0, %v1016
    %v1018 = vpop.f32.mrb[0].mxu0
    %v1019 = vpop.f32.mrb[0].mxu0
    %v1020 = vpop.f32.mrb[0].mxu0
    %1021 = vdwg.mxu0
    %v1022 = vunpack.c.l.bf16 %v961
    %v1023 = vadd.f32 %v1022, %v1017
    %v1024 = vpack.c.bf16 %v940, %v940
    %1026 = vrot.lane.b32.xlu0 %v1024, 32
    %v1027 = vpop.permute.xlu0 %1026
    %v1029 = vsel %vm73, %v1027, 0
    %1031 = vmatprep.subr.bf16.mxu0 0
    %1032 = vmatpush1.bf16.msra.mxu0 %v975
    %1033 = vmatprep.subr.bf16.mxu0 0
    %1034 = vmatpush1.bf16.msra.mxu0 %v976
    %1035 = vmatprep.subr.bf16.mxu0 0
    %1036 = vmatpush1.bf16.msra.mxu0 0
    %1037 = vmatprep.subr.bf16.mxu0 0
    %1038 = vmatpush1.bf16.msra.mxu0 0
    %1039 = vmatprep.subr.bf16.mxu0 0
    %1040 = vmatpush1.bf16.msra.mxu0 0
    %1041 = vmatprep.subr.bf16.mxu0 0
    %1042 = vmatpush1.bf16.msra.mxu0 0
    %1043 = vmatprep.subr.bf16.mxu0 0
    %1044 = vmatpush1.bf16.msra.mxu0 0
    %1045 = vmatprep.subr.bf16.mxu0 0
    %1046 = vmatpush1.bf16.msra.mxu0 0
    %1047 = vmatprep.subr.bf16.mxu0 0
    %1048 = vmatpush1.bf16.msra.mxu0 0
    %1049 = vmatprep.subr.bf16.mxu0 0
    %1050 = vmatpush1.bf16.msra.mxu0 0
    %1051 = vmatprep.subr.bf16.mxu0 0
    %1052 = vmatpush1.bf16.msra.mxu0 0
    %1053 = vmatprep.subr.bf16.mxu0 0
    %1054 = vmatpush1.bf16.msra.mxu0 0
    %1055 = vmatprep.subr.bf16.mxu0 0
    %1056 = vmatpush1.bf16.msra.mxu0 0
    %1057 = vmatprep.subr.bf16.mxu0 0
    %1058 = vmatpush1.bf16.msra.mxu0 0
    %1059 = vmatprep.subr.bf16.mxu0 0
    %1060 = vmatpush1.bf16.msra.mxu0 0
    %1061 = vmatprep.subr.bf16.mxu0 0
    %1062 = vmatpush1.bf16.msra.mxu0 0
    %1063 = vmatprep.mubr.bf16.mxu0 0
    %1064 = vmatmul.mubr.bf16.gmra.mrb[0].mxu0 %v1029
    %v1065 = vpop.f32.mrb[0].mxu0
    %v1066 = vadd.f32 0.0, %v1065
    %v1067 = vpop.f32.mrb[0].mxu0
    %v1068 = vpop.f32.mrb[0].mxu0
    %v1069 = vpop.f32.mrb[0].mxu0
    %1070 = vdwg.mxu0
    %v1071 = vunpack.c.l.bf16 %v962
    %v1072 = vadd.f32 %v1071, %v1066
    %v1073 = vxor.u32 %v1023, 2147483648
    %v1074 = vmul.f32 %v1073, 1.442695
    %v1075 = vpow.pop %v1074
    %v1076 = vadd.f32 %v1075, 1.0
    %v1077 = vrcp.pop %v1076
    %v1078 = vmul.f32 1.0, %v1077
    %v1079 = vtanh.pop %v1023
    %v1080 = vmul.f32 %v1078, %v910
    %1082 = vrot.lane.b32.xlu0 %v1079, 64
    %v1083 = vpop.permute.xlu0 %1082
    %v1085 = vmul.f32 %v1078, %v1083
    %1087 = vrot.lane.b32.xlu0 %v1085, 32
    %v1088 = vpop.permute.xlu0 %1087
    %v1090 = vadd.f32 %v1080, %v1088
    %v1091 = vtanh.pop %v1090
    %1093 = vrot.lane.b32.xlu0 %v1091, 64
    %v1094 = vpop.permute.xlu0 %1093
    %v1096 = vmul.f32 %v1078, %v1094
    %v1097 = vxor.u32 %v1072, 2147483648
    %v1098 = vmul.f32 %v1097, 1.442695
    %v1099 = vpow.pop %v1098
    %v1100 = vadd.f32 %v1099, 1.0
    %v1101 = vrcp.pop %v1100
    %v1102 = vmul.f32 1.0, %v1101
    %v1103 = vtanh.pop %v1072
    %v1104 = vmul.f32 %v1102, %v934
    %1106 = vrot.lane.b32.xlu0 %v1103, 64
    %v1107 = vpop.permute.xlu0 %1106
    %v1109 = vmul.f32 %v1102, %v1107
    %1111 = vrot.lane.b32.xlu0 %v1109, 32
    %v1112 = vpop.permute.xlu0 %1111
    %v1114 = vadd.f32 %v1104, %v1112
    %v1115 = vtanh.pop %v1114
    %1117 = vrot.lane.b32.xlu0 %v1115, 64
    %v1118 = vpop.permute.xlu0 %1117
    %v1120 = vmul.f32 %v1102, %v1118
    %v1121 = vpack.c.bf16 %v1120, %v1096
    %v1123 = vunpack.c.l.b16 %v1121
    %v1124 = vunpack.c.h.b16 %v1121
    %v1125 = vpack.c.b16 %v1123, %v1123
    %v1126 = vpack.c.b16 %v1124, %v1124
    %1127 = vrot.lane.b32.xlu0 %v1125, 32
    %v1128 = vpop.permute.xlu0 %1127
    %1129 = vrot.lane.b32.xlu0 %v1126, 32
    %v1130 = vpop.permute.xlu0 %1129
    %s1133 = scalar_lea.vmem [#allocation9], 40
    %1134 = vst.msk [vmem:[%s1133] sm:$0xf] %vm233, %v1128
    %1135 = vst.msk [vmem:[%s1133 + $0x4] sm:$0xf] %vm233, %v1130
    %v1136 = vld [vmem:[#allocation7] sm:$0xf]
    %v1137 = vld [vmem:[#allocation7 + $0x4] sm:$0xf]
    %v1138 = vld [vmem:[#allocation7 + $0x8] sm:$0xf]
    %v1139 = vld [vmem:[#allocation7 + $0xc] sm:$0xf]
    %s1140 = scalar_lea.vmem [#allocation4], 48
    %v1141 = vld [vmem:[%s1140] sm:$0xf]
    %v1142 = vld [vmem:[%s1140 + $0x4] sm:$0xf]
    %v1143 = vpack.c.bf16 %v1096, %v1096
    %1145 = vrot.lane.b32.xlu0 %v1143, 32
    %v1146 = vpop.permute.xlu0 %1145
    %v1151 = vunpack.c.l.b16 %v1136
    %v1152 = vunpack.c.l.b16 %v1137
    %v1153 = vunpack.c.l.b16 %v1138
    %v1154 = vunpack.c.l.b16 %v1139
    %v1155 = vpack.c.b16 %v1152, %v1151
    %v1156 = vpack.c.b16 %v1154, %v1153
    %v1160 = vsel %vm73, %v1146, 0
    %1162 = vmatprep.subr.bf16.mxu0 0
    %1163 = vmatpush1.bf16.msra.mxu0 %v1155
    %1164 = vmatprep.subr.bf16.mxu0 0
    %1165 = vmatpush1.bf16.msra.mxu0 %v1156
    %1166 = vmatprep.subr.bf16.mxu0 0
    %1167 = vmatpush1.bf16.msra.mxu0 0
    %1168 = vmatprep.subr.bf16.mxu0 0
    %1169 = vmatpush1.bf16.msra.mxu0 0
    %1170 = vmatprep.subr.bf16.mxu0 0
    %1171 = vmatpush1.bf16.msra.mxu0 0
    %1172 = vmatprep.subr.bf16.mxu0 0
    %1173 = vmatpush1.bf16.msra.mxu0 0
    %1174 = vmatprep.subr.bf16.mxu0 0
    %1175 = vmatpush1.bf16.msra.mxu0 0
    %1176 = vmatprep.subr.bf16.mxu0 0
    %1177 = vmatpush1.bf16.msra.mxu0 0
    %1178 = vmatprep.subr.bf16.mxu0 0
    %1179 = vmatpush1.bf16.msra.mxu0 0
    %1180 = vmatprep.subr.bf16.mxu0 0
    %1181 = vmatpush1.bf16.msra.mxu0 0
    %1182 = vmatprep.subr.bf16.mxu0 0
    %1183 = vmatpush1.bf16.msra.mxu0 0
    %1184 = vmatprep.subr.bf16.mxu0 0
    %1185 = vmatpush1.bf16.msra.mxu0 0
    %1186 = vmatprep.subr.bf16.mxu0 0
    %1187 = vmatpush1.bf16.msra.mxu0 0
    %1188 = vmatprep.subr.bf16.mxu0 0
    %1189 = vmatpush1.bf16.msra.mxu0 0
    %1190 = vmatprep.subr.bf16.mxu0 0
    %1191 = vmatpush1.bf16.msra.mxu0 0
    %1192 = vmatprep.subr.bf16.mxu0 0
    %1193 = vmatpush1.bf16.msra.mxu0 0
    %1194 = vmatprep.mubr.bf16.mxu0 0
    %1195 = vmatmul.mubr.bf16.gmra.mrb[0].mxu0 %v1160
    %v1196 = vpop.f32.mrb[0].mxu0
    %v1197 = vadd.f32 0.0, %v1196
    %v1198 = vpop.f32.mrb[0].mxu0
    %v1199 = vpop.f32.mrb[0].mxu0
    %v1200 = vpop.f32.mrb[0].mxu0
    %1201 = vdwg.mxu0
    %v1202 = vunpack.c.l.bf16 %v1141
    %v1203 = vadd.f32 %v1202, %v1197
    %v1204 = vpack.c.bf16 %v1120, %v1120
    %1206 = vrot.lane.b32.xlu0 %v1204, 32
    %v1207 = vpop.permute.xlu0 %1206
    %v1209 = vsel %vm73, %v1207, 0
    %1211 = vmatprep.subr.bf16.mxu0 0
    %1212 = vmatpush1.bf16.msra.mxu0 %v1155
    %1213 = vmatprep.subr.bf16.mxu0 0
    %1214 = vmatpush1.bf16.msra.mxu0 %v1156
    %1215 = vmatprep.subr.bf16.mxu0 0
    %1216 = vmatpush1.bf16.msra.mxu0 0
    %1217 = vmatprep.subr.bf16.mxu0 0
    %1218 = vmatpush1.bf16.msra.mxu0 0
    %1219 = vmatprep.subr.bf16.mxu0 0
    %1220 = vmatpush1.bf16.msra.mxu0 0
    %1221 = vmatprep.subr.bf16.mxu0 0
    %1222 = vmatpush1.bf16.msra.mxu0 0
    %1223 = vmatprep.subr.bf16.mxu0 0
    %1224 = vmatpush1.bf16.msra.mxu0 0
    %1225 = vmatprep.subr.bf16.mxu0 0
    %1226 = vmatpush1.bf16.msra.mxu0 0
    %1227 = vmatprep.subr.bf16.mxu0 0
    %1228 = vmatpush1.bf16.msra.mxu0 0
    %1229 = vmatprep.subr.bf16.mxu0 0
    %1230 = vmatpush1.bf16.msra.mxu0 0
    %1231 = vmatprep.subr.bf16.mxu0 0
    %1232 = vmatpush1.bf16.msra.mxu0 0
    %1233 = vmatprep.subr.bf16.mxu0 0
    %1234 = vmatpush1.bf16.msra.mxu0 0
    %1235 = vmatprep.subr.bf16.mxu0 0
    %1236 = vmatpush1.bf16.msra.mxu0 0
    %1237 = vmatprep.subr.bf16.mxu0 0
    %1238 = vmatpush1.bf16.msra.mxu0 0
    %1239 = vmatprep.subr.bf16.mxu0 0
    %1240 = vmatpush1.bf16.msra.mxu0 0
    %1241 = vmatprep.subr.bf16.mxu0 0
    %1242 = vmatpush1.bf16.msra.mxu0 0
    %1243 = vmatprep.mubr.bf16.mxu0 0
    %1244 = vmatmul.mubr.bf16.gmra.mrb[0].mxu0 %v1209
    %v1245 = vpop.f32.mrb[0].mxu0
    %v1246 = vadd.f32 0.0, %v1245
    %v1247 = vpop.f32.mrb[0].mxu0
    %v1248 = vpop.f32.mrb[0].mxu0
    %v1249 = vpop.f32.mrb[0].mxu0
    %1250 = vdwg.mxu0
    %v1251 = vunpack.c.l.bf16 %v1142
    %v1252 = vadd.f32 %v1251, %v1246
    %v1253 = vxor.u32 %v1203, 2147483648
    %v1254 = vmul.f32 %v1253, 1.442695
    %v1255 = vpow.pop %v1254
    %v1256 = vadd.f32 %v1255, 1.0
    %v1257 = vrcp.pop %v1256
    %v1258 = vmul.f32 1.0, %v1257
    %v1259 = vtanh.pop %v1203
    %v1260 = vmul.f32 %v1258, %v1090
    %1262 = vrot.lane.b32.xlu0 %v1259, 64
    %v1263 = vpop.permute.xlu0 %1262
    %v1265 = vmul.f32 %v1258, %v1263
    %1267 = vrot.lane.b32.xlu0 %v1265, 32
    %v1268 = vpop.permute.xlu0 %1267
    %v1270 = vadd.f32 %v1260, %v1268
    %v1271 = vtanh.pop %v1270
    %1273 = vrot.lane.b32.xlu0 %v1271, 64
    %v1274 = vpop.permute.xlu0 %1273
    %v1276 = vmul.f32 %v1258, %v1274
    %v1277 = vxor.u32 %v1252, 2147483648
    %v1278 = vmul.f32 %v1277, 1.442695
    %v1279 = vpow.pop %v1278
    %v1280 = vadd.f32 %v1279, 1.0
    %v1281 = vrcp.pop %v1280
    %v1282 = vmul.f32 1.0, %v1281
    %v1283 = vtanh.pop %v1252
    %v1284 = vmul.f32 %v1282, %v1114
    %1286 = vrot.lane.b32.xlu0 %v1283, 64
    %v1287 = vpop.permute.xlu0 %1286
    %v1289 = vmul.f32 %v1282, %v1287
    %1291 = vrot.lane.b32.xlu0 %v1289, 32
    %v1292 = vpop.permute.xlu0 %1291
    %v1294 = vadd.f32 %v1284, %v1292
    %v1295 = vtanh.pop %v1294
    %1297 = vrot.lane.b32.xlu0 %v1295, 64
    %v1298 = vpop.permute.xlu0 %1297
    %v1300 = vmul.f32 %v1282, %v1298
    %v1301 = vpack.c.bf16 %v1300, %v1276
    %v1303 = vunpack.c.l.b16 %v1301
    %v1304 = vunpack.c.h.b16 %v1301
    %v1305 = vpack.c.b16 %v1303, %v1303
    %v1306 = vpack.c.b16 %v1304, %v1304
    %1307 = vrot.lane.b32.xlu0 %v1305, 32
    %v1308 = vpop.permute.xlu0 %1307
    %1309 = vrot.lane.b32.xlu0 %v1306, 32
    %v1310 = vpop.permute.xlu0 %1309
    %s1313 = scalar_lea.vmem [#allocation9], 48
    %1314 = vst.msk [vmem:[%s1313] sm:$0xf] %vm233, %v1308
    %1315 = vst.msk [vmem:[%s1313 + $0x4] sm:$0xf] %vm233, %v1310
    %v1316 = vld [vmem:[#allocation7] sm:$0xf]
    %v1317 = vld [vmem:[#allocation7 + $0x4] sm:$0xf]
    %v1318 = vld [vmem:[#allocation7 + $0x8] sm:$0xf]
    %v1319 = vld [vmem:[#allocation7 + $0xc] sm:$0xf]
    %s1320 = scalar_lea.vmem [#allocation4], 56
    %v1321 = vld [vmem:[%s1320] sm:$0xf]
    %v1322 = vld [vmem:[%s1320 + $0x4] sm:$0xf]
    %v1323 = vpack.c.bf16 %v1276, %v1276
    %1325 = vrot.lane.b32.xlu0 %v1323, 32
    %v1326 = vpop.permute.xlu0 %1325
    %v1331 = vunpack.c.l.b16 %v1316
    %v1332 = vunpack.c.l.b16 %v1317
    %v1333 = vunpack.c.l.b16 %v1318
    %v1334 = vunpack.c.l.b16 %v1319
    %v1335 = vpack.c.b16 %v1332, %v1331
    %v1336 = vpack.c.b16 %v1334, %v1333
    %v1340 = vsel %vm73, %v1326, 0
    %1342 = vmatprep.subr.bf16.mxu0 0
    %1343 = vmatpush1.bf16.msra.mxu0 %v1335
    %1344 = vmatprep.subr.bf16.mxu0 0
    %1345 = vmatpush1.bf16.msra.mxu0 %v1336
    %1346 = vmatprep.subr.bf16.mxu0 0
    %1347 = vmatpush1.bf16.msra.mxu0 0
    %1348 = vmatprep.subr.bf16.mxu0 0
    %1349 = vmatpush1.bf16.msra.mxu0 0
    %1350 = vmatprep.subr.bf16.mxu0 0
    %1351 = vmatpush1.bf16.msra.mxu0 0
    %1352 = vmatprep.subr.bf16.mxu0 0
    %1353 = vmatpush1.bf16.msra.mxu0 0
    %1354 = vmatprep.subr.bf16.mxu0 0
    %1355 = vmatpush1.bf16.msra.mxu0 0
    %1356 = vmatprep.subr.bf16.mxu0 0
    %1357 = vmatpush1.bf16.msra.mxu0 0
    %1358 = vmatprep.subr.bf16.mxu0 0
    %1359 = vmatpush1.bf16.msra.mxu0 0
    %1360 = vmatprep.subr.bf16.mxu0 0
    %1361 = vmatpush1.bf16.msra.mxu0 0
    %1362 = vmatprep.subr.bf16.mxu0 0
    %1363 = vmatpush1.bf16.msra.mxu0 0
    %1364 = vmatprep.subr.bf16.mxu0 0
    %1365 = vmatpush1.bf16.msra.mxu0 0
    %1366 = vmatprep.subr.bf16.mxu0 0
    %1367 = vmatpush1.bf16.msra.mxu0 0
    %1368 = vmatprep.subr.bf16.mxu0 0
    %1369 = vmatpush1.bf16.msra.mxu0 0
    %1370 = vmatprep.subr.bf16.mxu0 0
    %1371 = vmatpush1.bf16.msra.mxu0 0
    %1372 = vmatprep.subr.bf16.mxu0 0
    %1373 = vmatpush1.bf16.msra.mxu0 0
    %1374 = vmatprep.mubr.bf16.mxu0 0
    %1375 = vmatmul.mubr.bf16.gmra.mrb[0].mxu0 %v1340
    %v1376 = vpop.f32.mrb[0].mxu0
    %v1377 = vadd.f32 0.0, %v1376
    %v1378 = vpop.f32.mrb[0].mxu0
    %v1379 = vpop.f32.mrb[0].mxu0
    %v1380 = vpop.f32.mrb[0].mxu0
    %1381 = vdwg.mxu0
    %v1382 = vunpack.c.l.bf16 %v1321
    %v1383 = vadd.f32 %v1382, %v1377
    %v1384 = vpack.c.bf16 %v1300, %v1300
    %1386 = vrot.lane.b32.xlu0 %v1384, 32
    %v1387 = vpop.permute.xlu0 %1386
    %v1389 = vsel %vm73, %v1387, 0
    %1391 = vmatprep.subr.bf16.mxu0 0
    %1392 = vmatpush1.bf16.msra.mxu0 %v1335
    %1393 = vmatprep.subr.bf16.mxu0 0
    %1394 = vmatpush1.bf16.msra.mxu0 %v1336
    %1395 = vmatprep.subr.bf16.mxu0 0
    %1396 = vmatpush1.bf16.msra.mxu0 0
    %1397 = vmatprep.subr.bf16.mxu0 0
    %1398 = vmatpush1.bf16.msra.mxu0 0
    %1399 = vmatprep.subr.bf16.mxu0 0
    %1400 = vmatpush1.bf16.msra.mxu0 0
    %1401 = vmatprep.subr.bf16.mxu0 0
    %1402 = vmatpush1.bf16.msra.mxu0 0
    %1403 = vmatprep.subr.bf16.mxu0 0
    %1404 = vmatpush1.bf16.msra.mxu0 0
    %1405 = vmatprep.subr.bf16.mxu0 0
    %1406 = vmatpush1.bf16.msra.mxu0 0
    %1407 = vmatprep.subr.bf16.mxu0 0
    %1408 = vmatpush1.bf16.msra.mxu0 0
    %1409 = vmatprep.subr.bf16.mxu0 0
    %1410 = vmatpush1.bf16.msra.mxu0 0
    %1411 = vmatprep.subr.bf16.mxu0 0
    %1412 = vmatpush1.bf16.msra.mxu0 0
    %1413 = vmatprep.subr.bf16.mxu0 0
    %1414 = vmatpush1.bf16.msra.mxu0 0
    %1415 = vmatprep.subr.bf16.mxu0 0
    %1416 = vmatpush1.bf16.msra.mxu0 0
    %1417 = vmatprep.subr.bf16.mxu0 0
    %1418 = vmatpush1.bf16.msra.mxu0 0
    %1419 = vmatprep.subr.bf16.mxu0 0
    %1420 = vmatpush1.bf16.msra.mxu0 0
    %1421 = vmatprep.subr.bf16.mxu0 0
    %1422 = vmatpush1.bf16.msra.mxu0 0
    %1423 = vmatprep.mubr.bf16.mxu0 0
    %1424 = vmatmul.mubr.bf16.gmra.mrb[0].mxu0 %v1389
    %v1425 = vpop.f32.mrb[0].mxu0
    %v1426 = vadd.f32 0.0, %v1425
    %v1427 = vpop.f32.mrb[0].mxu0
    %v1428 = vpop.f32.mrb[0].mxu0
    %v1429 = vpop.f32.mrb[0].mxu0
    %1430 = vdwg.mxu0
    %v1431 = vunpack.c.l.bf16 %v1322
    %v1432 = vadd.f32 %v1431, %v1426
    %v1433 = vxor.u32 %v1383, 2147483648
    %v1434 = vmul.f32 %v1433, 1.442695
    %v1435 = vpow.pop %v1434
    %v1436 = vadd.f32 %v1435, 1.0
    %v1437 = vrcp.pop %v1436
    %v1438 = vmul.f32 1.0, %v1437
    %v1439 = vtanh.pop %v1383
    %v1440 = vmul.f32 %v1438, %v1270
    %1442 = vrot.lane.b32.xlu0 %v1439, 64
    %v1443 = vpop.permute.xlu0 %1442
    %v1445 = vmul.f32 %v1438, %v1443
    %1447 = vrot.lane.b32.xlu0 %v1445, 32
    %v1448 = vpop.permute.xlu0 %1447
    %v1450 = vadd.f32 %v1440, %v1448
    %v1451 = vtanh.pop %v1450
    %1453 = vrot.lane.b32.xlu0 %v1451, 64
    %v1454 = vpop.permute.xlu0 %1453
    %v1456 = vmul.f32 %v1438, %v1454
    %v1457 = vxor.u32 %v1432, 2147483648
    %v1458 = vmul.f32 %v1457, 1.442695
    %v1459 = vpow.pop %v1458
    %v1460 = vadd.f32 %v1459, 1.0
    %v1461 = vrcp.pop %v1460
    %v1462 = vmul.f32 1.0, %v1461
    %v1463 = vtanh.pop %v1432
    %v1464 = vmul.f32 %v1462, %v1294
    %1466 = vrot.lane.b32.xlu0 %v1463, 64
    %v1467 = vpop.permute.xlu0 %1466
    %v1469 = vmul.f32 %v1462, %v1467
    %1471 = vrot.lane.b32.xlu0 %v1469, 32
    %v1472 = vpop.permute.xlu0 %1471
    %v1474 = vadd.f32 %v1464, %v1472
    %v1475 = vtanh.pop %v1474
    %1477 = vrot.lane.b32.xlu0 %v1475, 64
    %v1478 = vpop.permute.xlu0 %1477
    %v1480 = vmul.f32 %v1462, %v1478
    %v1481 = vpack.c.bf16 %v1480, %v1456
    %v1483 = vunpack.c.l.b16 %v1481
    %v1484 = vunpack.c.h.b16 %v1481
    %v1485 = vpack.c.b16 %v1483, %v1483
    %v1486 = vpack.c.b16 %v1484, %v1484
    %1487 = vrot.lane.b32.xlu0 %v1485, 32
    %v1488 = vpop.permute.xlu0 %1487
    %1489 = vrot.lane.b32.xlu0 %v1486, 32
    %v1490 = vpop.permute.xlu0 %1489
    %s1493 = scalar_lea.vmem [#allocation9], 56
    %1494 = vst.msk [vmem:[%s1493] sm:$0xf] %vm233, %v1488
    %1495 = vst.msk [vmem:[%s1493 + $0x4] sm:$0xf] %vm233, %v1490
    %1497 = vrot.lane.b32.xlu0 %v1456, 32
    %v1498 = vpop.permute.xlu0 %1497
    %1500 = vst.msk [vmem:[#allocation2] sm:$0xff] %vm73, %v1498
    %1502 = vrot.lane.b32.xlu0 %v1450, 96
    %v1503 = vpop.permute.xlu0 %1502
    %1505 = vst.msk [vmem:[#allocation3] sm:$0xff] %vm73, %v1503
    %1507 = vrot.lane.b32.xlu0 %v1480, 32
    %v1508 = vpop.permute.xlu0 %1507
    %1510 = vst.msk [vmem:[#allocation2 + $0x8] sm:$0xff] %vm73, %v1508
    %1512 = vrot.lane.b32.xlu0 %v1474, 96
    %v1513 = vpop.permute.xlu0 %1512
    %1515 = vst.msk [vmem:[#allocation3 + $0x8] sm:$0xff] %vm73, %v1513
    // Predicated region
    $region22: #{tpu_custom_call.1} parent=1 // pred_check
      _
    $region23: #{tpu_custom_call.1} parent=1 // pred_check_branch
      %1517 = sbr.rel (0) target = $region25
    $region24: #{tpu_custom_call.1} parent=1 // pred_region
      %s1519 = ssub.s32 1024, 1024
      %1520 = vsyncadd [#allocation6], %s1519
      %s1521 = sshll.u32 [#allocation9], 4
      %s1522 = int_to_ptr.vmem [resolvable:$true] %s1521
      %1527 = dma.vmem_to_hbm [thread:$0]  %s1522, 1024, %s2, [#allocation6], 64, 64, 4
    $region25: #{tpu_custom_call.1} parent=1 // pred_fallthru
      _
    // Predicated region
    $region26: #{tpu_custom_call.1} parent=1 // pred_check
      _
    $region27: #{tpu_custom_call.1} parent=1 // pred_check_branch
      %1529 = sbr.rel (0) target = $region29
    $region28: #{tpu_custom_call.1} parent=1 // pred_region
      %1530 = dma.done [#allocation6], 1024
    $region29: #{tpu_custom_call.1} parent=1 // pred_fallthru
      _
    %1531 = vsyncpa [#allocation5], 1
    %1532 = vsyncpa [#allocation8], 1
    %1533 = vsyncpa [#allocation6], 1

</llo_original>
